<compile_context>
chip_gen: v7x
topology: tpu7x:2x2x1
jax: 0.10.0
libtpu: 0.0.40
codegen_flags: <defaults>
</compile_context>

<pallas_src>
import functools

import jax
import jax.numpy as jnp
from jax.experimental import pallas as pl
from jax.experimental.pallas import tpu as pltpu


def _six_term_lane_sums(a, b, c, hw, *, W, L):
    """Lane-reduced sums of the six squared second-derivative stencils.

    a, b, c : (C, R, L) f32 slabs at depth d-1, d, d+1 for R center rows,
              with H and W folded into the lane axis L = H*W.
    hw      : (1, 1, L) f32 interior mask over the folded H/W axis.
    Returns six (C, R) f32 arrays (ddx, ddy, ddz, dxdy, dydz, dxdz); lanes
    contaminated by roll wrap-around are zeroed by `hw` at the output.
    """
    def lro(t, k):
        # value at folded H*W offset +k, aligned to every center lane
        return pltpu.roll(t, shift=(-k) % L, axis=2)

    def red(t):
        # square, mask, lane-reduce.  (An MXU dot with the mask column is an
        # alternative if the XLU/extended slot ever saturates.)
        return jnp.sum((t * t) * hw, axis=2)             # (C, R)

    b2 = 2.0 * b                                          # hoisted, used 3x
    bhp, bhm = lro(b, W), lro(b, -W)                      # b at h+1 / h-1
    bwp, bwm = lro(b, 1), lro(b, -1)                      # b at w+1 / w-1
    v = c - a                                             # reused: dxdy, dxdz
    dh = bhp - bhm                                        # reused: dydz

    ddx = red(a + c - b2)
    ddy = red(bhp + bhm - b2)
    ddz = red(bwp + bwm - b2)
    dxdy = red(lro(v, W) - lro(v, -W))
    dydz = red(lro(dh, 1) - lro(dh, -1))
    dxdz = red(lro(v, 1) - lro(v, -1))
    return [ddx, ddy, ddz, dxdy, dydz, dxdz]              # 10 rolls total


def _combine_terms(lane_sums, row_w):
    """Fold six (C, R) lane-reduced term sums into one (C, 6) tile.

    Uses broadcast + select on a (C, 6) value instead of a lane-axis
    concatenate (trivially cheap at this size, guaranteed to lower)."""
    col_idx = jax.lax.broadcasted_iota(jnp.int32, (1, 6), 1)
    total = jnp.zeros((lane_sums[0].shape[0], 6), jnp.float32)
    for j, s in enumerate(lane_sums):
        col = jnp.sum(s * row_w, axis=1, keepdims=True)   # (C, 1)
        total = total + jnp.where(col_idx == j, col, 0.0)
    return total


def _bending_energy_kernel(hw_ref, x_ref, out_ref, win_ref, *, td, D, W, ndt):
    """One (batch, D-tile) grid step.

    hw_ref  : (1, 1, L)     f32 H/W-interior mask over the folded lane axis
    x_ref   : (1, C, td, L) current D-tile of the field
    out_ref : (1, C, 6)     per-channel sums of squared 2nd derivatives,
                            resident (accumulated) across the D grid axis
    win_ref : (C, 4, L)     seam window: rows 0:2 carry the previous tile's
                            last two D-slabs; rows 2:4 stage the current
                            tile's first two D-slabs for the seam centers
    """
    L = hw_ref.shape[-1]
    dt = pl.program_id(1)
    hw = hw_ref[...]                                       # (1, 1, L)

    @pl.when(dt == 0)
    def _init():
        out_ref[...] = jnp.zeros_like(out_ref)

    # ---- bulk centers: all three D-slabs live inside the current tile ----
    # row i = 0..td-3 handles global center c = dt*td + 1 + i
    a = x_ref[0, :, 0:td - 2, :].astype(jnp.float32)       # slab c-1
    b = x_ref[0, :, 1:td - 1, :].astype(jnp.float32)       # slab c
    c = x_ref[0, :, 2:td, :].astype(jnp.float32)           # slab c+1
    lane_sums = _six_term_lane_sums(a, b, c, hw, W=W, L=L)  # 6 x (C, td-2)

    # per-row validity (D interior + zero-padding guard): c <= D-2
    i_idx = jax.lax.broadcasted_iota(jnp.int32, (1, td - 2), 1)
    row_w = (i_idx <= (D - 3 - dt * td)).astype(jnp.float32)
    out_ref[...] += _combine_terms(lane_sums, row_w)[None]

    if ndt > 1:
        # ---- seam centers c = dt*td - 1 and dt*td (need previous tile) ----
        @pl.when(dt > 0)
        def _seam():
            win_ref[:, 2:4, :] = x_ref[0, :, 0:2, :].astype(jnp.float32)
            a_s = win_ref[:, 0:2, :]                       # slabs c-1
            b_s = win_ref[:, 1:3, :]                       # slabs c
            c_s = win_ref[:, 2:4, :]                       # slabs c+1
            seam_sums = _six_term_lane_sums(a_s, b_s, c_s, hw, W=W, L=L)
            j_idx = jax.lax.broadcasted_iota(jnp.int32, (1, 2), 1)
            seam_w = ((dt * td - 1 + j_idx) <= (D - 2)).astype(jnp.float32)
            out_ref[...] += _combine_terms(seam_sums, seam_w)[None]

        # carry this tile's last two D-slabs for the next tile's seam
        win_ref[:, 0:2, :] = x_ref[0, :, td - 2:td, :].astype(jnp.float32)


def _choose_tiling(D, C, L, tile_d, target_block_bytes):
    """Pick (tile_d, padded_D): the D-tile is a multiple of 8 (or all of D)
    and the (1, C, tile_d, L) f32 input block stays under the byte target."""
    if tile_d is not None:
        if tile_d != D and tile_d % 8 != 0:
            raise ValueError(
                f"tile_d={tile_d} must be a multiple of 8 or equal D={D}")
        if tile_d == D:
            return D, D
        return tile_d, ((D + tile_d - 1) // tile_d) * tile_d
    slab_bytes = C * L * 4
    budget_rows = max(8, target_block_bytes // max(slab_bytes, 1))
    if D <= budget_rows:
        return D, D
    divisors = [t for t in range(8, D, 8) if D % t == 0 and t <= budget_rows]
    if divisors:
        td = max(divisors)
    else:
        td = (budget_rows // 8) * 8        # ragged: zero-pad D below
    return td, ((D + td - 1) // td) * td


def _per_term_sums(x, tile_d=None, target_block_bytes=8 * 1024 * 1024,
                   vmem_limit_bytes=48 * 1024 * 1024):
    """Per-(batch, channel, term) sums of squared second derivatives over the
    interior voxels.  Returns float32 of shape (N, C, 6)."""
    N, C, D, H, W = x.shape
    L = H * W
    td, D_pad = _choose_tiling(D, C, L, tile_d, target_block_bytes)
    ndt = D_pad // td

    xr = x.reshape(N, C, D, L)             # fold H, W into the lane axis
    if D_pad != D:
        xr = jnp.pad(xr, ((0, 0), (0, 0), (0, D_pad - D), (0, 0)))

    # H/W-interior mask built once on the host side (keeps iota // W, % W and
    # the boundary compares out of the per-element kernel work).
    l_idx = jnp.arange(L, dtype=jnp.int32)
    h_idx, w_idx = l_idx // W, l_idx % W
    hw_mask = (((h_idx >= 1) & (h_idx <= H - 2)
                & (w_idx >= 1) & (w_idx <= W - 2))
               .astype(jnp.float32).reshape(1, 1, L))

    kernel = functools.partial(_bending_energy_kernel,
                               td=td, D=D, W=W, ndt=ndt)

    # TODO(synk): on v7x, add a second "parallel" grid axis splitting D (with
    # its own seam handling) so single-batch calls can feed both TensorCores.
    return pl.pallas_call(
        kernel,
        out_shape=jax.ShapeDtypeStruct((N, C, 6), jnp.float32),
        grid=(N, ndt),
        in_specs=[pl.BlockSpec((1, 1, L), lambda n, dt: (0, 0, 0)),
                  pl.BlockSpec((1, C, td, L), lambda n, dt: (n, 0, dt, 0))],
        out_specs=pl.BlockSpec((1, C, 6), lambda n, dt: (n, 0, 0)),
        scratch_shapes=[pltpu.VMEM((C, 4, L), jnp.float32)],
        compiler_params=pltpu.CompilerParams(
            dimension_semantics=("parallel", "arbitrary"),
            vmem_limit_bytes=vmem_limit_bytes),
        cost_estimate=pl.CostEstimate(
            flops=50 * N * C * D * H * W,
            transcendentals=0,
            bytes_accessed=4 * N * C * D_pad * L + 4 * (N * C * 6 + L)),
    )(hw_mask, xr)


@functools.partial(jax.jit,
                   static_argnames=("spacing", "normalize", "norm", "tile_d"))
def bending_energy_loss(x, spacing=(1.0, 1.0, 1.0), normalize=True,
                        norm="L2", tile_d=None):
    """JAX/Pallas equivalent of BendingEnergyLoss.forward (L2 norm).

    x: (N, 3, D, H, W) float32 deformation field.  Returns a scalar float32.
    """
    # TODO(synk): only the 'L2' branch (module default) is implemented; the
    # PyTorch 'L1' path (unsquared, unscaled means) is not reproduced here.
    assert norm == "L2"
    N, C, D, H, W = x.shape

    sums = _per_term_sums(x, tile_d=tile_d)           # (N, C, 6)
    n_vox = float((D - 2) * (H - 2) * (W - 2))
    means = sums / n_vox                              # == (dd*)**2 .mean(2)

    spacing_v = jnp.asarray(spacing, dtype=jnp.float32)
    spatial_dims = jnp.asarray([D, H, W], dtype=jnp.float32)
    if normalize:
        spacing_v = spacing_v / jnp.min(spacing_v)
        spatial_dims = spatial_dims / jnp.min(spatial_dims)

    s0, s1, s2 = spacing_v[0], spacing_v[1], spacing_v[2]
    base = spatial_dims * spacing_v                   # (3,), indexed by channel
    scales = jnp.stack(                               # scales[channel, term]
        [(base / (s0 * s0)) ** 2,
         (base / (s1 * s1)) ** 2,
         (base / (s2 * s2)) ** 2,
         (base / (s0 * s1)) ** 2,
         (base / (s1 * s2)) ** 2,
         (base / (s2 * s0)) ** 2],
        axis=-1)                                      # (3, 6)

    scaled = means * scales[None, :, :]               # (N, 3, 6)
    per_term = jnp.mean(scaled, axis=(0, 1))          # (6,)
    weights = jnp.asarray([1.0, 1.0, 1.0, 2.0, 2.0, 2.0], dtype=jnp.float32)
    return jnp.sum(per_term * weights) / 9.0


def _reference_loss(x, spacing=(1.0, 1.0, 1.0), normalize=True):
    """Pure-JAX reference mirroring the PyTorch forward (L2)."""
    N, C, D, H, W = x.shape
    spacing_v = jnp.asarray(spacing, dtype=jnp.float32)
    spatial_dims = jnp.asarray([D, H, W], dtype=jnp.float32)
    if normalize:
        spacing_v = spacing_v / jnp.min(spacing_v)
        spatial_dims = spatial_dims / jnp.min(spatial_dims)
    c = x[:, :, 1:-1, 1:-1, 1:-1]
    ddx = jnp.abs(x[:, :, 2:, 1:-1, 1:-1] + x[:, :, :-2, 1:-1, 1:-1] - 2 * c)
    ddy = jnp.abs(x[:, :, 1:-1, 2:, 1:-1] + x[:, :, 1:-1, :-2, 1:-1] - 2 * c)
    ddz = jnp.abs(x[:, :, 1:-1, 1:-1, 2:] + x[:, :, 1:-1, 1:-1, :-2] - 2 * c)
    dxdy = jnp.abs(x[:, :, 2:, 2:, 1:-1] + x[:, :, :-2, :-2, 1:-1]
                   - x[:, :, 2:, :-2, 1:-1] - x[:, :, :-2, 2:, 1:-1])
    dydz = jnp.abs(x[:, :, 1:-1, 2:, 2:] + x[:, :, 1:-1, :-2, :-2]
                   - x[:, :, 1:-1, 2:, :-2] - x[:, :, 1:-1, :-2, 2:])
    dxdz = jnp.abs(x[:, :, 2:, 1:-1, 2:] + x[:, :, :-2, 1:-1, :-2]
                   - x[:, :, 2:, 1:-1, :-2] - x[:, :, :-2, 1:-1, 2:])

    def m(t):
        return jnp.mean(t.reshape(N, C, -1) ** 2, axis=2)

    s0, s1, s2 = spacing_v[0], spacing_v[1], spacing_v[2]
    ddx_m = m(ddx) * (spatial_dims * spacing_v / s0 ** 2) ** 2
    ddy_m = m(ddy) * (spatial_dims * spacing_v / s1 ** 2) ** 2
    ddz_m = m(ddz) * (spatial_dims * spacing_v / s2 ** 2) ** 2
    dxdy_m = m(dxdy) * (spatial_dims * spacing_v / (s0 * s1)) ** 2
    dydz_m = m(dydz) * (spatial_dims * spacing_v / (s1 * s2)) ** 2
    dxdz_m = m(dxdz) * (spatial_dims * spacing_v / (s2 * s0)) ** 2
    return (ddx_m.mean() + ddy_m.mean() + ddz_m.mean()
            + 2 * dxdy_m.mean() + 2 * dydz_m.mean() + 2 * dxdz_m.mean()) / 9.0


if __name__ == "__main__":
    key = jax.random.PRNGKey(0)
    # deformation field: N=2, C=3 (x/y/z components), D=H=W=16
    x = jax.random.normal(key, (2, 3, 16, 16, 16), dtype=jnp.float32)

    # Default tiling (single D-tile at this size).
    loss = bending_energy_loss(x, spacing=(1.0, 1.0, 1.0), normalize=True)
    loss = jax.block_until_ready(loss)
    ref = _reference_loss(x, spacing=(1.0, 1.0, 1.0), normalize=True)
    assert jnp.allclose(loss, ref, rtol=1e-5, atol=1e-5), (loss, ref)

    # Explicit D-tiling (exercises the seam/carry path) + anisotropic spacing.
    loss_t = bending_energy_loss(x, spacing=(1.0, 1.5, 2.0), normalize=True,
                                 tile_d=8)
    loss_t = jax.block_until_ready(loss_t)
    ref_t = _reference_loss(x, spacing=(1.0, 1.5, 2.0), normalize=True)
    assert jnp.allclose(loss_t, ref_t, rtol=1e-5, atol=1e-5), (loss_t, ref_t)

    print("KERNEL_OK")
</pallas_src>

<mosaic_0001>
module attributes {stable_mosaic.version = 11 : i64} {
  func.func @_bending_energy_kernel(%arg0: i32, %arg1: i32, %arg2: memref<1x1x256xf32, #tpu.memory_space<vmem>>, %arg3: memref<1x3x16x256xf32, #tpu.memory_space<vmem>>, %arg4: memref<1x3x6xf32, #tpu.memory_space<vmem>>, %arg5: memref<3x4x256xf32, #tpu.memory_space<vmem>>) attributes {dimension_semantics = [#tpu.dimension_semantics<parallel>, #tpu.dimension_semantics<arbitrary>], iteration_bounds = array<i64: 2, 1>, scalar_prefetch = 0 : i64, scratch_operands = 1 : i64, tpu.core_type = #tpu.core_type<tc>, window_params = [{pipeline_mode = #tpu.pipeline_mode<synchronous>, transform_indices = @transform_0, window_bounds = array<i64: 1, 1, 256>}, {transform_indices = @transform_1, window_bounds = array<i64: 1, 3, 16, 256>}, {transform_indices = @transform_2, window_bounds = array<i64: 1, 3, 6>}]} {
    %c0 = arith.constant 0 : index
    %c0_0 = arith.constant 0 : index
    %c0_1 = arith.constant 0 : index
    %0 = vector.load %arg2[%c0, %c0_0, %c0_1] : memref<1x1x256xf32, #tpu.memory_space<vmem>>, vector<1x1x256xf32>
    %c0_i32 = arith.constant 0 : i32
    %1 = arith.cmpi eq, %arg1, %c0_i32 : i32
    %2 = arith.extui %1 : i1 to i32
    %c0_i32_2 = arith.constant 0 : i32
    %3 = arith.cmpi ne, %2, %c0_i32_2 : i32
    scf.if %3 {
      %cst_47 = arith.constant 0.000000e+00 : f32
      %148 = vector.broadcast %cst_47 : f32 to vector<1x3x6xf32>
      %c0_48 = arith.constant 0 : index
      %c0_49 = arith.constant 0 : index
      %c0_50 = arith.constant 0 : index
      %149 = vector.load %arg4[%c0_48, %c0_49, %c0_50] : memref<1x3x6xf32, #tpu.memory_space<vmem>>, vector<1x3x6xf32>
      tpu.vector_store %arg4[%c0_48, %c0_49, %c0_50], %148 {strides = array<i32>} : memref<1x3x6xf32, #tpu.memory_space<vmem>>, vector<1x3x6xf32>,
    } else {
    }
    %c0_3 = arith.constant 0 : index
    %c0_4 = arith.constant 0 : index
    %c0_5 = arith.constant 0 : index
    %c0_6 = arith.constant 0 : index
    %4 = vector.load %arg3[%c0_3, %c0_4, %c0_5, %c0_6] : memref<1x3x16x256xf32, #tpu.memory_space<vmem>>, vector<1x3x14x256xf32>
    %5 = vector.shape_cast %4 : vector<1x3x14x256xf32> to vector<3x14x256xf32>
    %c0_7 = arith.constant 0 : index
    %c0_8 = arith.constant 0 : index
    %c1 = arith.constant 1 : index
    %c0_9 = arith.constant 0 : index
    %6 = vector.load %arg3[%c0_7, %c0_8, %c1, %c0_9] : memref<1x3x16x256xf32, #tpu.memory_space<vmem>>, vector<1x3x14x256xf32>
    %7 = vector.shape_cast %6 : vector<1x3x14x256xf32> to vector<3x14x256xf32>
    %c0_10 = arith.constant 0 : index
    %c0_11 = arith.constant 0 : index
    %c2 = arith.constant 2 : index
    %c0_12 = arith.constant 0 : index
    %8 = vector.load %arg3[%c0_10, %c0_11, %c2, %c0_12] : memref<1x3x16x256xf32, #tpu.memory_space<vmem>>, vector<1x3x14x256xf32>
    %9 = vector.shape_cast %8 : vector<1x3x14x256xf32> to vector<3x14x256xf32>
    %cst = arith.constant 2.000000e+00 : f32
    %10 = vector.broadcast %cst : f32 to vector<3x14x256xf32>
    %11 = arith.mulf %10, %7 : vector<3x14x256xf32>
    %c240_i32 = arith.constant 240 : i32
    %12 = tpu.dynamic_rotate %7 by %c240_i32 dim 2 : vector<3x14x256xf32>, i32 -> vector<3x14x256xf32>
    %c16_i32 = arith.constant 16 : i32
    %13 = tpu.dynamic_rotate %7 by %c16_i32 dim 2 : vector<3x14x256xf32>, i32 -> vector<3x14x256xf32>
    %c255_i32 = arith.constant 255 : i32
    %14 = tpu.dynamic_rotate %7 by %c255_i32 dim 2 : vector<3x14x256xf32>, i32 -> vector<3x14x256xf32>
    %c1_i32 = arith.constant 1 : i32
    %15 = tpu.dynamic_rotate %7 by %c1_i32 dim 2 : vector<3x14x256xf32>, i32 -> vector<3x14x256xf32>
    %16 = arith.subf %9, %5 : vector<3x14x256xf32>
    %17 = arith.subf %12, %13 : vector<3x14x256xf32>
    %18 = arith.addf %5, %9 : vector<3x14x256xf32>
    %19 = arith.subf %18, %11 : vector<3x14x256xf32>
    %20 = arith.mulf %19, %19 : vector<3x14x256xf32>
    %21 = vector.broadcast %0 : vector<1x1x256xf32> to vector<3x14x256xf32>
    %22 = arith.mulf %20, %21 : vector<3x14x256xf32>
    %cst_13 = arith.constant dense<0.000000e+00> : vector<3x14xf32>
    %23 = vector.multi_reduction <add>, %22, %cst_13 [2] : vector<3x14x256xf32> to vector<3x14xf32>
    %24 = arith.addf %12, %13 : vector<3x14x256xf32>
    %25 = arith.subf %24, %11 : vector<3x14x256xf32>
    %26 = arith.mulf %25, %25 : vector<3x14x256xf32>
    %27 = vector.broadcast %0 : vector<1x1x256xf32> to vector<3x14x256xf32>
    %28 = arith.mulf %26, %27 : vector<3x14x256xf32>
    %cst_14 = arith.constant dense<0.000000e+00> : vector<3x14xf32>
    %29 = vector.multi_reduction <add>, %28, %cst_14 [2] : vector<3x14x256xf32> to vector<3x14xf32>
    %30 = arith.addf %14, %15 : vector<3x14x256xf32>
    %31 = arith.subf %30, %11 : vector<3x14x256xf32>
    %32 = arith.mulf %31, %31 : vector<3x14x256xf32>
    %33 = vector.broadcast %0 : vector<1x1x256xf32> to vector<3x14x256xf32>
    %34 = arith.mulf %32, %33 : vector<3x14x256xf32>
    %cst_15 = arith.constant dense<0.000000e+00> : vector<3x14xf32>
    %35 = vector.multi_reduction <add>, %34, %cst_15 [2] : vector<3x14x256xf32> to vector<3x14xf32>
    %c240_i32_16 = arith.constant 240 : i32
    %36 = tpu.dynamic_rotate %16 by %c240_i32_16 dim 2 : vector<3x14x256xf32>, i32 -> vector<3x14x256xf32>
    %c16_i32_17 = arith.constant 16 : i32
    %37 = tpu.dynamic_rotate %16 by %c16_i32_17 dim 2 : vector<3x14x256xf32>, i32 -> vector<3x14x256xf32>
    %38 = arith.subf %36, %37 : vector<3x14x256xf32>
    %39 = arith.mulf %38, %38 : vector<3x14x256xf32>
    %40 = vector.broadcast %0 : vector<1x1x256xf32> to vector<3x14x256xf32>
    %41 = arith.mulf %39, %40 : vector<3x14x256xf32>
    %cst_18 = arith.constant dense<0.000000e+00> : vector<3x14xf32>
    %42 = vector.multi_reduction <add>, %41, %cst_18 [2] : vector<3x14x256xf32> to vector<3x14xf32>
    %c255_i32_19 = arith.constant 255 : i32
    %43 = tpu.dynamic_rotate %17 by %c255_i32_19 dim 2 : vector<3x14x256xf32>, i32 -> vector<3x14x256xf32>
    %c1_i32_20 = arith.constant 1 : i32
    %44 = tpu.dynamic_rotate %17 by %c1_i32_20 dim 2 : vector<3x14x256xf32>, i32 -> vector<3x14x256xf32>
    %45 = arith.subf %43, %44 : vector<3x14x256xf32>
    %46 = arith.mulf %45, %45 : vector<3x14x256xf32>
    %47 = vector.broadcast %0 : vector<1x1x256xf32> to vector<3x14x256xf32>
    %48 = arith.mulf %46, %47 : vector<3x14x256xf32>
    %cst_21 = arith.constant dense<0.000000e+00> : vector<3x14xf32>
    %49 = vector.multi_reduction <add>, %48, %cst_21 [2] : vector<3x14x256xf32> to vector<3x14xf32>
    %c255_i32_22 = arith.constant 255 : i32
    %50 = tpu.dynamic_rotate %16 by %c255_i32_22 dim 2 : vector<3x14x256xf32>, i32 -> vector<3x14x256xf32>
    %c1_i32_23 = arith.constant 1 : i32
    %51 = tpu.dynamic_rotate %16 by %c1_i32_23 dim 2 : vector<3x14x256xf32>, i32 -> vector<3x14x256xf32>
    %52 = arith.subf %50, %51 : vector<3x14x256xf32>
    %53 = arith.mulf %52, %52 : vector<3x14x256xf32>
    %54 = vector.broadcast %0 : vector<1x1x256xf32> to vector<3x14x256xf32>
    %55 = arith.mulf %53, %54 : vector<3x14x256xf32>
    %cst_24 = arith.constant dense<0.000000e+00> : vector<3x14xf32>
    %56 = vector.multi_reduction <add>, %55, %cst_24 [2] : vector<3x14x256xf32> to vector<3x14xf32>
    %57 = tpu.iota {dimensions = array<i32: 1>} : vector<1x14xi32>
    %c16_i32_25 = arith.constant 16 : i32
    %58 = arith.muli %arg1, %c16_i32_25 : i32
    %c13_i32 = arith.constant 13 : i32
    %59 = arith.subi %c13_i32, %58 : i32
    %60 = vector.broadcast %59 : i32 to vector<1x14xi32>
    %61 = arith.cmpi sle, %57, %60 : vector<1x14xi32>
    %62 = arith.extui %61 : vector<1x14xi1> to vector<1x14xi32>
    %63 = arith.sitofp %62 : vector<1x14xi32> to vector<1x14xf32>
    %c0_26 = arith.constant 0 : index
    %c0_27 = arith.constant 0 : index
    %c0_28 = arith.constant 0 : index
    %64 = vector.load %arg4[%c0_26, %c0_27, %c0_28] : memref<1x3x6xf32, #tpu.memory_space<vmem>>, vector<1x3x6xf32>
    %65 = tpu.iota {dimensions = array<i32: 1>} : vector<1x6xi32>
    %cst_29 = arith.constant 0.000000e+00 : f32
    %66 = vector.broadcast %cst_29 : f32 to vector<3x6xf32>
    %67 = vector.broadcast %63 : vector<1x14xf32> to vector<3x14xf32>
    %68 = arith.mulf %23, %67 : vector<3x14xf32>
    %cst_30 = arith.constant dense<0.000000e+00> : vector<3xf32>
    %69 = vector.multi_reduction <add>, %68, %cst_30 [1] : vector<3x14xf32> to vector<3xf32>
    %70 = vector.shape_cast %69 : vector<3xf32> to vector<3x1xf32>
    %c0_i32_31 = arith.constant 0 : i32
    %71 = vector.broadcast %c0_i32_31 : i32 to vector<1x6xi32>
    %72 = arith.cmpi eq, %65, %71 : vector<1x6xi32>
    %cst_32 = arith.constant 0.000000e+00 : f32
    %73 = vector.shape_cast %72 : vector<1x6xi1> to vector<1x6xi1>
    %74 = vector.broadcast %73 : vector<1x6xi1> to vector<3x6xi1>
    %75 = vector.shape_cast %70 : vector<3x1xf32> to vector<3x1xf32>
    %76 = vector.broadcast %75 : vector<3x1xf32> to vector<3x6xf32>
    %77 = vector.broadcast %cst_32 : f32 to vector<3x6xf32>
    %78 = arith.select %74, %76, %77 : vector<3x6xi1>, vector<3x6xf32>
    %79 = arith.addf %66, %78 : vector<3x6xf32>
    %80 = vector.broadcast %63 : vector<1x14xf32> to vector<3x14xf32>
    %81 = arith.mulf %29, %80 : vector<3x14xf32>
    %cst_33 = arith.constant dense<0.000000e+00> : vector<3xf32>
    %82 = vector.multi_reduction <add>, %81, %cst_33 [1] : vector<3x14xf32> to vector<3xf32>
    %83 = vector.shape_cast %82 : vector<3xf32> to vector<3x1xf32>
    %c1_i32_34 = arith.constant 1 : i32
    %84 = vector.broadcast %c1_i32_34 : i32 to vector<1x6xi32>
    %85 = arith.cmpi eq, %65, %84 : vector<1x6xi32>
    %cst_35 = arith.constant 0.000000e+00 : f32
    %86 = vector.shape_cast %85 : vector<1x6xi1> to vector<1x6xi1>
    %87 = vector.broadcast %86 : vector<1x6xi1> to vector<3x6xi1>
    %88 = vector.shape_cast %83 : vector<3x1xf32> to vector<3x1xf32>
    %89 = vector.broadcast %88 : vector<3x1xf32> to vector<3x6xf32>
    %90 = vector.broadcast %cst_35 : f32 to vector<3x6xf32>
    %91 = arith.select %87, %89, %90 : vector<3x6xi1>, vector<3x6xf32>
    %92 = arith.addf %79, %91 : vector<3x6xf32>
    %93 = vector.broadcast %63 : vector<1x14xf32> to vector<3x14xf32>
    %94 = arith.mulf %35, %93 : vector<3x14xf32>
    %cst_36 = arith.constant dense<0.000000e+00> : vector<3xf32>
    %95 = vector.multi_reduction <add>, %94, %cst_36 [1] : vector<3x14xf32> to vector<3xf32>
    %96 = vector.shape_cast %95 : vector<3xf32> to vector<3x1xf32>
    %c2_i32 = arith.constant 2 : i32
    %97 = vector.broadcast %c2_i32 : i32 to vector<1x6xi32>
    %98 = arith.cmpi eq, %65, %97 : vector<1x6xi32>
    %cst_37 = arith.constant 0.000000e+00 : f32
    %99 = vector.shape_cast %98 : vector<1x6xi1> to vector<1x6xi1>
    %100 = vector.broadcast %99 : vector<1x6xi1> to vector<3x6xi1>
    %101 = vector.shape_cast %96 : vector<3x1xf32> to vector<3x1xf32>
    %102 = vector.broadcast %101 : vector<3x1xf32> to vector<3x6xf32>
    %103 = vector.broadcast %cst_37 : f32 to vector<3x6xf32>
    %104 = arith.select %100, %102, %103 : vector<3x6xi1>, vector<3x6xf32>
    %105 = arith.addf %92, %104 : vector<3x6xf32>
    %106 = vector.broadcast %63 : vector<1x14xf32> to vector<3x14xf32>
    %107 = arith.mulf %42, %106 : vector<3x14xf32>
    %cst_38 = arith.constant dense<0.000000e+00> : vector<3xf32>
    %108 = vector.multi_reduction <add>, %107, %cst_38 [1] : vector<3x14xf32> to vector<3xf32>
    %109 = vector.shape_cast %108 : vector<3xf32> to vector<3x1xf32>
    %c3_i32 = arith.constant 3 : i32
    %110 = vector.broadcast %c3_i32 : i32 to vector<1x6xi32>
    %111 = arith.cmpi eq, %65, %110 : vector<1x6xi32>
    %cst_39 = arith.constant 0.000000e+00 : f32
    %112 = vector.shape_cast %111 : vector<1x6xi1> to vector<1x6xi1>
    %113 = vector.broadcast %112 : vector<1x6xi1> to vector<3x6xi1>
    %114 = vector.shape_cast %109 : vector<3x1xf32> to vector<3x1xf32>
    %115 = vector.broadcast %114 : vector<3x1xf32> to vector<3x6xf32>
    %116 = vector.broadcast %cst_39 : f32 to vector<3x6xf32>
    %117 = arith.select %113, %115, %116 : vector<3x6xi1>, vector<3x6xf32>
    %118 = arith.addf %105, %117 : vector<3x6xf32>
    %119 = vector.broadcast %63 : vector<1x14xf32> to vector<3x14xf32>
    %120 = arith.mulf %49, %119 : vector<3x14xf32>
    %cst_40 = arith.constant dense<0.000000e+00> : vector<3xf32>
    %121 = vector.multi_reduction <add>, %120, %cst_40 [1] : vector<3x14xf32> to vector<3xf32>
    %122 = vector.shape_cast %121 : vector<3xf32> to vector<3x1xf32>
    %c4_i32 = arith.constant 4 : i32
    %123 = vector.broadcast %c4_i32 : i32 to vector<1x6xi32>
    %124 = arith.cmpi eq, %65, %123 : vector<1x6xi32>
    %cst_41 = arith.constant 0.000000e+00 : f32
    %125 = vector.shape_cast %124 : vector<1x6xi1> to vector<1x6xi1>
    %126 = vector.broadcast %125 : vector<1x6xi1> to vector<3x6xi1>
    %127 = vector.shape_cast %122 : vector<3x1xf32> to vector<3x1xf32>
    %128 = vector.broadcast %127 : vector<3x1xf32> to vector<3x6xf32>
    %129 = vector.broadcast %cst_41 : f32 to vector<3x6xf32>
    %130 = arith.select %126, %128, %129 : vector<3x6xi1>, vector<3x6xf32>
    %131 = arith.addf %118, %130 : vector<3x6xf32>
    %132 = vector.broadcast %63 : vector<1x14xf32> to vector<3x14xf32>
    %133 = arith.mulf %56, %132 : vector<3x14xf32>
    %cst_42 = arith.constant dense<0.000000e+00> : vector<3xf32>
    %134 = vector.multi_reduction <add>, %133, %cst_42 [1] : vector<3x14xf32> to vector<3xf32>
    %135 = vector.shape_cast %134 : vector<3xf32> to vector<3x1xf32>
    %c5_i32 = arith.constant 5 : i32
    %136 = vector.broadcast %c5_i32 : i32 to vector<1x6xi32>
    %137 = arith.cmpi eq, %65, %136 : vector<1x6xi32>
    %cst_43 = arith.constant 0.000000e+00 : f32
    %138 = vector.shape_cast %137 : vector<1x6xi1> to vector<1x6xi1>
    %139 = vector.broadcast %138 : vector<1x6xi1> to vector<3x6xi1>
    %140 = vector.shape_cast %135 : vector<3x1xf32> to vector<3x1xf32>
    %141 = vector.broadcast %140 : vector<3x1xf32> to vector<3x6xf32>
    %142 = vector.broadcast %cst_43 : f32 to vector<3x6xf32>
    %143 = arith.select %139, %141, %142 : vector<3x6xi1>, vector<3x6xf32>
    %144 = arith.addf %131, %143 : vector<3x6xf32>
    %145 = vector.shape_cast %144 : vector<3x6xf32> to vector<1x3x6xf32>
    %146 = arith.addf %64, %145 : vector<1x3x6xf32>
    %c0_44 = arith.constant 0 : index
    %c0_45 = arith.constant 0 : index
    %c0_46 = arith.constant 0 : index
    %147 = vector.load %arg4[%c0_44, %c0_45, %c0_46] : memref<1x3x6xf32, #tpu.memory_space<vmem>>, vector<1x3x6xf32>
    tpu.vector_store %arg4[%c0_44, %c0_45, %c0_46], %146 {strides = array<i32>} : memref<1x3x6xf32, #tpu.memory_space<vmem>>, vector<1x3x6xf32>,
    return
  }
  func.func @transform_0(%arg0: i32, %arg1: i32) -> (i32, i32, i32) {
    %c0_i32 = arith.constant 0 : i32
    %c0_i32_0 = arith.constant 0 : i32
    %c0_i32_1 = arith.constant 0 : i32
    %c0_i32_2 = arith.constant 0 : i32
    return %c0_i32, %c0_i32_0, %c0_i32_1 : i32, i32, i32
  }
  func.func @transform_1(%arg0: i32, %arg1: i32) -> (i32, i32, i32, i32) {
    %c0_i32 = arith.constant 0 : i32
    %c0_i32_0 = arith.constant 0 : i32
    %c0_i32_1 = arith.constant 0 : i32
    return %arg0, %c0_i32, %arg1, %c0_i32_0 : i32, i32, i32, i32
  }
  func.func @transform_2(%arg0: i32, %arg1: i32) -> (i32, i32, i32) {
    %c0_i32 = arith.constant 0 : i32
    %c0_i32_0 = arith.constant 0 : i32
    %c0_i32_1 = arith.constant 0 : i32
    return %arg0, %c0_i32, %c0_i32_0 : i32, i32, i32
  }
}

</mosaic_0001>

<llo_original>
// kernel: bending_energy_loss.1
$region0: #{bending_energy_loss.1}
  #allocation0 [shape = 'u32[]', space=smem, size = 0x4, offset = 0x4, fixed_abs, tag = 'smem constant byte address 0x4 - core index']
  #allocation1 [shape = 'u32[144,128]{1,0:T(1,128)}', space=vmem, size = 0x12000, scoped, tag = 'internal scratch']
  #allocation2 [shape = 'f32[3,4,256]{2,1,0:T(4,128)}', space=vmem, size = 0x3000, scoped, tag = 'scratch operand']
  %s0 = inlined_call_operand.vmem [shape: f32[1,1,256], index: 0, kind: input, shape index: {}]
  %s1 = inlined_call_operand.vmem [shape: f32[2,3,16,256], index: 1, kind: input, shape index: {}]
  %s2 = inlined_call_operand.vmem [shape: f32[2,3,6], index: 2, kind: output, shape index: {}]
  %s3 = sld [smem:[#allocation0]]
  $region45: #{bending_energy_loss.1} parent=0
    _
  %s5 = ssub.s32 1, %s3
  %s6 = scalar_select 0, %s5, %s3
  loop: start=0, step=1, limit=4
  $region2: #{bending_energy_loss.1} parent=0 // loop_pre_header
    _
  $region3: #{bending_energy_loss.1} parent=0 // loop_header
    %s8 = sphi 0, %s12
    %p9 = scmp.ge.s32.totalorder %s8, 4
    %s15 = sphi 0, %s27
    %s16 = sphi 0, %s23
    %s17 = sphi 0, %s15
    %s18 = sphi 0, %s16
    %s19 = sphi 0, %s17
    %s20 = sphi 0, %s18
    %s28 = sphi 0, %s28
    %s30 = sphi 0, %s28
    %s31 = sphi 0, %s30
    %s45 = sphi 0, %s31
    %s53 = sphi 0, %s55
    %s56 = sphi 0, %s53
    %s57 = sphi 0, %s56
    %s73 = sphi 0, %s57
    %s79 = sphi 0, %s81
    %s82 = sphi 0, %s79
    %s83 = sphi 0, %s82
    %s99 = sphi 0, %s83
  $region4: #{bending_energy_loss.1} parent=0 // loop_header_branch
    %11 = sbr.rel (%p9) target = $region8
  $region5: #{bending_energy_loss.1} parent=0 // loop_body
    %s13 = ssub.s32 %s8, 1
    %s14 = ssub.s32 %s8, 2
    %s21 = sadd.s32 1, %s16
    %p22 = scmp.ge.s32.totalorder %s21, 1
    %s23 = scalar_select %p22, 0, %s21
    %s24 = sadd.s32 1, %s15
    %s25 = scalar_select %p22, %s24, %s15
    %p26 = scmp.ge.s32.totalorder %s25, 2
    %s27 = scalar_select %p26, 0, %s25
    %s29 = sadd.s32 %s28, 1
    %p32 = scmp.eq.s32.totalorder %s8, 1
    %p33 = scmp.ne.s32.totalorder %s28, %s30
    %p34 = scmp.eq.s32.totalorder %s8, 0
    %p35 = por %p33, %p34
    %p36 = scmp.ne.s32.totalorder %s28, %s30
    %p37 = scmp.eq.s32.totalorder %s13, 1
    %p38 = por %p36, %p37
    %p39 = scmp.ne.s32.totalorder %s30, %s31
    %p40 = scmp.eq.s32.totalorder %s13, 0
    %p41 = por %p39, %p40
    %p42 = scmp.ne.s32.totalorder %s30, %s31
    %p43 = scmp.eq.s32.totalorder %s14, 1
    %p44 = por %p42, %p43
    %p46 = scmp.ne.s32.totalorder %s31, %s45
    %p47 = scmp.eq.s32.totalorder %s14, 0
    %p48 = por %p46, %p47
    %s49 = ssub.s32 %s15, %s27
    %s50 = ssub.s32 %s16, %s23
    %s51 = sor.u32 %s49, %s50
    %p52 = scmp.eq.s32.totalorder %s51, 0
    %s54 = sadd.s32 %s53, 1
    %s55 = scalar_select %p52, %s53, %s54
    %p58 = pneg %p52
    %p59 = scmp.eq.s32.totalorder %s8, 1
    %p60 = por %p58, %p59
    %p61 = scmp.ne.s32.totalorder %s53, %s56
    %p62 = scmp.eq.s32.totalorder %s8, 0
    %p63 = por %p61, %p62
    %p64 = scmp.ne.s32.totalorder %s53, %s56
    %p65 = scmp.eq.s32.totalorder %s13, 1
    %p66 = por %p64, %p65
    %p67 = scmp.ne.s32.totalorder %s56, %s57
    %p68 = scmp.eq.s32.totalorder %s13, 0
    %p69 = por %p67, %p68
    %p70 = scmp.ne.s32.totalorder %s56, %s57
    %p71 = scmp.eq.s32.totalorder %s14, 1
    %p72 = por %p70, %p71
    %p74 = scmp.ne.s32.totalorder %s57, %s73
    %p75 = scmp.eq.s32.totalorder %s14, 0
    %p76 = por %p74, %p75
    %s77 = ssub.s32 %s15, %s27
    %p78 = scmp.eq.s32.totalorder %s77, 0
    %s80 = sadd.s32 %s79, 1
    %s81 = scalar_select %p78, %s79, %s80
    %p84 = pneg %p78
    %p85 = scmp.eq.s32.totalorder %s8, 1
    %p86 = por %p84, %p85
    %p87 = scmp.ne.s32.totalorder %s79, %s82
    %p88 = scmp.eq.s32.totalorder %s8, 0
    %p89 = por %p87, %p88
    %p90 = scmp.ne.s32.totalorder %s79, %s82
    %p91 = scmp.eq.s32.totalorder %s13, 1
    %p92 = por %p90, %p91
    %p93 = scmp.ne.s32.totalorder %s82, %s83
    %p94 = scmp.eq.s32.totalorder %s13, 0
    %p95 = por %p93, %p94
    %p96 = scmp.ne.s32.totalorder %s82, %s83
    %p97 = scmp.eq.s32.totalorder %s14, 1
    %p98 = por %p96, %p97
    %p100 = scmp.ne.s32.totalorder %s83, %s99
    %p101 = scmp.eq.s32.totalorder %s14, 0
    %p102 = por %p100, %p101
    %p103 = scmp.le.s32.totalorder 1, %s8
    %p104 = scmp.lt.s32.totalorder %s8, 3
    %p105 = pnand %p103, %p104
    %p106 = pneg %p105
    // Predicated region
    $region9: #{bending_energy_loss.1} parent=5 // pred_check
      _
    $region10: #{bending_energy_loss.1} parent=5 // pred_check_branch
      %108 = sbr.rel (%p105) target = $region12
    $region11: #{bending_energy_loss.1} parent=5 // pred_region
      %s109 = ssub.s32 %s8, 1
      // Predicated region
      $region13: #{bending_energy_loss.1} parent=11 // pred_check
        %p110 = pneg %p41
      $region14: #{bending_energy_loss.1} parent=11 // pred_check_branch
        %112 = sbr.rel (%p110) target = $region16
      $region15: #{bending_energy_loss.1} parent=11 // pred_region
        _
      $region16: #{bending_energy_loss.1} parent=11 // pred_fallthru
        _
    $region12: #{bending_energy_loss.1} parent=5 // pred_fallthru
      _
    %p113 = scmp.lt.s32.totalorder %s8, 2
    // Predicated region
    $region17: #{bending_energy_loss.1} parent=5 // pred_check
      %p114 = pneg %p113
    $region18: #{bending_energy_loss.1} parent=5 // pred_check_branch
      %116 = sbr.rel (%p114) target = $region20
    $region19: #{bending_energy_loss.1} parent=5 // pred_region
      // Predicated region
      $region21: #{bending_energy_loss.1} parent=19 // pred_check
        %p117 = pneg %p63
      $region22: #{bending_energy_loss.1} parent=19 // pred_check_branch
        %119 = sbr.rel (%p117) target = $region24
      $region23: #{bending_energy_loss.1} parent=19 // pred_region
        %s120 = smul.u32 2, %s16
        %p121 = scmp.lt.s32.totalorder %s15, 1
        %s122 = scalar_select %p121, %s15, 1
        %p123 = scmp.lt.s32.totalorder %s120, 1
        %s124 = scalar_select %p123, %s120, 1
        %s125 = smul.addr %s124, 2
        %s126 = smul.addr %s122, 12
        %s127 = sadd.s32 %s125, %s126
        %s128 = smul.addr %s127, 8
        %s129 = scalar_lea.vmem %s1, %s128
        %s130 = smul.u32 2, %s16
      $region24: #{bending_energy_loss.1} parent=19 // pred_fallthru
        _
    $region20: #{bending_energy_loss.1} parent=5 // pred_fallthru
      _
    %p131 = scmp.le.s32.totalorder 1, %s8
    %p132 = scmp.lt.s32.totalorder %s8, 3
    %p133 = pnand %p131, %p132
    %p134 = pneg %p133
    // Predicated region
    $region25: #{bending_energy_loss.1} parent=5 // pred_check
      _
    $region26: #{bending_energy_loss.1} parent=5 // pred_check_branch
      %136 = sbr.rel (%p133) target = $region28
    $region27: #{bending_energy_loss.1} parent=5 // pred_region
      %s137 = ssub.s32 %s8, 1
      %p138 = pneg %p41
      %p139 = pneg %p38
      %s140 = smul.u32 2, %s18
      %p141 = scmp.lt.s32.totalorder %s17, 1
      %s142 = scalar_select %p141, %s17, 1
      %p143 = scmp.lt.s32.totalorder %s140, 1
      %s144 = scalar_select %p143, %s140, 1
      %s145 = smul.addr %s144, 2
      %s146 = smul.addr %s142, 12
      %s147 = sadd.s32 %s145, %s146
      %s148 = smul.addr %s147, 8
      %s149 = scalar_lea.vmem %s1, %s148
      %p150 = pneg %p69
      %p151 = pneg %p66
      %p152 = pneg %p95
      %p153 = pneg %p92
      %p154 = scmp.lt.s32.totalorder %s17, 1
      %s155 = scalar_select %p154, %s17, 1
      %s156 = smul.addr %s155, 4
      %s157 = scalar_lea.vmem %s2, %s156
      %s158 = smul.u32 2, %s18
      %p159 = scmp.lt.s32.totalorder %s17, 1
      %s160 = scalar_select %p159, %s17, 1
      %p161 = scmp.lt.s32.totalorder %s158, 1
      %s162 = scalar_select %p161, %s158, 1
      %s163 = smul.addr %s162, 2
      %s164 = smul.addr %s160, 12
      %s165 = sadd.s32 %s163, %s164
      %s166 = smul.addr %s165, 8
      %s167 = scalar_lea.vmem %s1, %s166
      %s168 = smul.u32 2, %s18
      %p169 = scmp.lt.s32.totalorder %s17, 1
      %s170 = scalar_select %p169, %s17, 1
      %s171 = smul.addr %s170, 4
      %s172 = scalar_lea.vmem %s2, %s171
      %v173 = vld [vmem:[%s0] sm:$0x3]
      %p174 = scmp.eq.s32.totalorder %s18, 0
      // Predicated region
      $region29: #{bending_energy_loss.1} parent=27 // pred_check
        %p175 = pneg %p174
      $region30: #{bending_energy_loss.1} parent=27 // pred_check_branch
        %177 = sbr.rel (%p175) target = $region32
      $region31: #{bending_energy_loss.1} parent=27 // pred_region
        %vm178 = vcmask 43008
        %179 = vst.msk [vmem:[%s172] sm:$0x7] %vm178, 0.0
      $region32: #{bending_energy_loss.1} parent=27 // pred_fallthru
        _
      %v180 = vld [vmem:[%s167] sm:$0xff]
      %v181 = vld [vmem:[%s167 + $0x8] sm:$0xff]
      %v182 = vld [vmem:[%s167 + $0x10] sm:$0x3f]
      %v183 = vld [vmem:[%s167 + $0x18] sm:$0x3f]
      %v184 = vld [vmem:[%s167 + $0x20] sm:$0xff]
      %v185 = vld [vmem:[%s167 + $0x28] sm:$0xff]
      %v186 = vld [vmem:[%s167 + $0x30] sm:$0x3f]
      %v187 = vld [vmem:[%s167 + $0x38] sm:$0x3f]
      %v188 = vld [vmem:[%s167 + $0x40] sm:$0xff]
      %v189 = vld [vmem:[%s167 + $0x48] sm:$0xff]
      %v190 = vld [vmem:[%s167 + $0x50] sm:$0x3f]
      %v191 = vld [vmem:[%s167 + $0x58] sm:$0x3f]
      %v192 = vld [vmem:[%s167] sm:$0xfe]
      %v193 = vld [vmem:[%s167 + $0x8] sm:$0xfe]
      %v194 = vld [vmem:[%s167 + $0x10] sm:$0x7f]
      %v195 = vld [vmem:[%s167 + $0x18] sm:$0x7f]
      %v196 = vld [vmem:[%s167 + $0x20] sm:$0xfe]
      %v197 = vld [vmem:[%s167 + $0x28] sm:$0xfe]
      %v198 = vld [vmem:[%s167 + $0x30] sm:$0x7f]
      %v199 = vld [vmem:[%s167 + $0x38] sm:$0x7f]
      %v200 = vld [vmem:[%s167 + $0x40] sm:$0xfe]
      %v201 = vld [vmem:[%s167 + $0x48] sm:$0xfe]
      %v202 = vld [vmem:[%s167 + $0x50] sm:$0x7f]
      %v203 = vld [vmem:[%s167 + $0x58] sm:$0x7f]
      %v204 = vld [vmem:[%s167] sm:$0xfc]
      %v205 = vld [vmem:[%s167 + $0x8] sm:$0xfc]
      %v206 = vld [vmem:[%s167 + $0x10] sm:$0xff]
      %v207 = vld [vmem:[%s167 + $0x18] sm:$0xff]
      %v208 = vld [vmem:[%s167 + $0x20] sm:$0xfc]
      %v209 = vld [vmem:[%s167 + $0x28] sm:$0xfc]
      %v210 = vld [vmem:[%s167 + $0x30] sm:$0xff]
      %v211 = vld [vmem:[%s167 + $0x38] sm:$0xff]
      %v212 = vld [vmem:[%s167 + $0x40] sm:$0xfc]
      %v213 = vld [vmem:[%s167 + $0x48] sm:$0xfc]
      %v214 = vld [vmem:[%s167 + $0x50] sm:$0xff]
      %v215 = vld [vmem:[%s167 + $0x58] sm:$0xff]
      %v216 = vmul.f32 %v192, 2.0
      %v217 = vmul.f32 %v193, 2.0
      %v218 = vmul.f32 %v194, 2.0
      %v219 = vmul.f32 %v195, 2.0
      %v220 = vmul.f32 %v196, 2.0
      %v221 = vmul.f32 %v197, 2.0
      %v222 = vmul.f32 %v198, 2.0
      %v223 = vmul.f32 %v199, 2.0
      %v224 = vmul.f32 %v200, 2.0
      %v225 = vmul.f32 %v201, 2.0
      %v226 = vmul.f32 %v202, 2.0
      %v227 = vmul.f32 %v203, 2.0
      %vm240 = vcmask 1046528
      %v241 = vrot.slane %v192, 1
      %v242 = vrot.slane %v194, 1
      %v243 = vsel %vm240, %v241, %v242
      %v244 = vrot.slane %v193, 1
      %v245 = vrot.slane %v195, 1
      %v246 = vsel %vm240, %v244, %v245
      %v247 = vrot.slane %v196, 1
      %v248 = vrot.slane %v198, 1
      %v249 = vsel %vm240, %v247, %v248
      %v250 = vrot.slane %v197, 1
      %v251 = vrot.slane %v199, 1
      %v252 = vsel %vm240, %v250, %v251
      %v253 = vrot.slane %v200, 1
      %v254 = vrot.slane %v202, 1
      %v255 = vsel %vm240, %v253, %v254
      %v256 = vrot.slane %v201, 1
      %v257 = vrot.slane %v203, 1
      %v258 = vsel %vm240, %v256, %v257
      %271 = vrot.lane.b32.xlu0 %v243, 112
      %v272 = vpop.permute.xlu0 %271
      %273 = vrot.lane.b32.xlu0 %v242, 112
      %v274 = vpop.permute.xlu0 %273
      %275 = vrot.lane.b32.xlu0 %v249, 112
      %v276 = vpop.permute.xlu0 %275
      %277 = vrot.lane.b32.xlu0 %v248, 112
      %v278 = vpop.permute.xlu0 %277
      %279 = vrot.lane.b32.xlu0 %v255, 112
      %v280 = vpop.permute.xlu0 %279
      %281 = vrot.lane.b32.xlu0 %v254, 112
      %v282 = vpop.permute.xlu0 %281
      %283 = vrot.lane.b32.xlu0 %v246, 112
      %v284 = vpop.permute.xlu0 %283
      %285 = vrot.lane.b32.xlu0 %v245, 112
      %v286 = vpop.permute.xlu0 %285
      %287 = vrot.lane.b32.xlu0 %v252, 112
      %v288 = vpop.permute.xlu0 %287
      %289 = vrot.lane.b32.xlu0 %v251, 112
      %v290 = vpop.permute.xlu0 %289
      %291 = vrot.lane.b32.xlu0 %v258, 112
      %v292 = vpop.permute.xlu0 %291
      %293 = vrot.lane.b32.xlu0 %v257, 112
      %v294 = vpop.permute.xlu0 %293
      %v295 = vlaneseq
      %v296 = vand.u32 %v295, 127
      %vm297 = vcmp.lt.s32.totalorder %v296, 112
      %v298 = vsel %vm297, %v272, %v284
      %v299 = vsel %vm297, %v274, %v286
      %v300 = vsel %vm297, %v276, %v288
      %v301 = vsel %vm297, %v278, %v290
      %v302 = vsel %vm297, %v280, %v292
      %v303 = vsel %vm297, %v282, %v294
      %v304 = vsel %vm297, %v284, %v272
      %v305 = vsel %vm297, %v286, %v274
      %v306 = vsel %vm297, %v288, %v276
      %v307 = vsel %vm297, %v290, %v278
      %v308 = vsel %vm297, %v292, %v280
      %v309 = vsel %vm297, %v294, %v282
      %310 = vrot.lane.b32.xlu0 %v243, 16
      %v311 = vpop.permute.xlu0 %310
      %312 = vrot.lane.b32.xlu0 %v242, 16
      %v313 = vpop.permute.xlu0 %312
      %314 = vrot.lane.b32.xlu0 %v249, 16
      %v315 = vpop.permute.xlu0 %314
      %316 = vrot.lane.b32.xlu0 %v248, 16
      %v317 = vpop.permute.xlu0 %316
      %318 = vrot.lane.b32.xlu0 %v255, 16
      %v319 = vpop.permute.xlu0 %318
      %320 = vrot.lane.b32.xlu0 %v254, 16
      %v321 = vpop.permute.xlu0 %320
      %322 = vrot.lane.b32.xlu0 %v246, 16
      %v323 = vpop.permute.xlu0 %322
      %324 = vrot.lane.b32.xlu0 %v245, 16
      %v325 = vpop.permute.xlu0 %324
      %326 = vrot.lane.b32.xlu0 %v252, 16
      %v327 = vpop.permute.xlu0 %326
      %328 = vrot.lane.b32.xlu0 %v251, 16
      %v329 = vpop.permute.xlu0 %328
      %330 = vrot.lane.b32.xlu0 %v258, 16
      %v331 = vpop.permute.xlu0 %330
      %332 = vrot.lane.b32.xlu0 %v257, 16
      %v333 = vpop.permute.xlu0 %332
      %vm334 = vcmp.lt.s32.totalorder %v296, 16
      %v335 = vsel %vm334, %v311, %v323
      %v336 = vsel %vm334, %v313, %v325
      %v337 = vsel %vm334, %v315, %v327
      %v338 = vsel %vm334, %v317, %v329
      %v339 = vsel %vm334, %v319, %v331
      %v340 = vsel %vm334, %v321, %v333
      %v341 = vsel %vm334, %v323, %v311
      %v342 = vsel %vm334, %v325, %v313
      %v343 = vsel %vm334, %v327, %v315
      %v344 = vsel %vm334, %v329, %v317
      %v345 = vsel %vm334, %v331, %v319
      %v346 = vsel %vm334, %v333, %v321
      %347 = vrot.lane.b32.xlu0 %v243, 127
      %v348 = vpop.permute.xlu0 %347
      %349 = vrot.lane.b32.xlu0 %v242, 127
      %v350 = vpop.permute.xlu0 %349
      %351 = vrot.lane.b32.xlu0 %v249, 127
      %v352 = vpop.permute.xlu0 %351
      %353 = vrot.lane.b32.xlu0 %v248, 127
      %v354 = vpop.permute.xlu0 %353
      %355 = vrot.lane.b32.xlu0 %v255, 127
      %v356 = vpop.permute.xlu0 %355
      %357 = vrot.lane.b32.xlu0 %v254, 127
      %v358 = vpop.permute.xlu0 %357
      %359 = vrot.lane.b32.xlu0 %v246, 127
      %v360 = vpop.permute.xlu0 %359
      %361 = vrot.lane.b32.xlu0 %v245, 127
      %v362 = vpop.permute.xlu0 %361
      %363 = vrot.lane.b32.xlu0 %v252, 127
      %v364 = vpop.permute.xlu0 %363
      %365 = vrot.lane.b32.xlu0 %v251, 127
      %v366 = vpop.permute.xlu0 %365
      %367 = vrot.lane.b32.xlu0 %v258, 127
      %v368 = vpop.permute.xlu0 %367
      %369 = vrot.lane.b32.xlu0 %v257, 127
      %v370 = vpop.permute.xlu0 %369
      %vm371 = vcmp.lt.s32.totalorder %v296, 127
      %v372 = vsel %vm371, %v348, %v360
      %v373 = vsel %vm371, %v350, %v362
      %v374 = vsel %vm371, %v352, %v364
      %v375 = vsel %vm371, %v354, %v366
      %v376 = vsel %vm371, %v356, %v368
      %v377 = vsel %vm371, %v358, %v370
      %v378 = vsel %vm371, %v360, %v348
      %v379 = vsel %vm371, %v362, %v350
      %v380 = vsel %vm371, %v364, %v352
      %v381 = vsel %vm371, %v366, %v354
      %v382 = vsel %vm371, %v368, %v356
      %v383 = vsel %vm371, %v370, %v358
      %384 = vrot.lane.b32.xlu0 %v243, 1
      %v385 = vpop.permute.xlu0 %384
      %386 = vrot.lane.b32.xlu0 %v242, 1
      %v387 = vpop.permute.xlu0 %386
      %388 = vrot.lane.b32.xlu0 %v249, 1
      %v389 = vpop.permute.xlu0 %388
      %390 = vrot.lane.b32.xlu0 %v248, 1
      %v391 = vpop.permute.xlu0 %390
      %392 = vrot.lane.b32.xlu0 %v255, 1
      %v393 = vpop.permute.xlu0 %392
      %394 = vrot.lane.b32.xlu0 %v254, 1
      %v395 = vpop.permute.xlu0 %394
      %396 = vrot.lane.b32.xlu0 %v246, 1
      %v397 = vpop.permute.xlu0 %396
      %398 = vrot.lane.b32.xlu0 %v245, 1
      %v399 = vpop.permute.xlu0 %398
      %400 = vrot.lane.b32.xlu0 %v252, 1
      %v401 = vpop.permute.xlu0 %400
      %402 = vrot.lane.b32.xlu0 %v251, 1
      %v403 = vpop.permute.xlu0 %402
      %404 = vrot.lane.b32.xlu0 %v258, 1
      %v405 = vpop.permute.xlu0 %404
      %406 = vrot.lane.b32.xlu0 %v257, 1
      %v407 = vpop.permute.xlu0 %406
      %vm408 = vcmp.lt.s32.totalorder %v296, 1
      %v409 = vsel %vm408, %v385, %v397
      %v410 = vsel %vm408, %v387, %v399
      %v411 = vsel %vm408, %v389, %v401
      %v412 = vsel %vm408, %v391, %v403
      %v413 = vsel %vm408, %v393, %v405
      %v414 = vsel %vm408, %v395, %v407
      %v415 = vsel %vm408, %v397, %v385
      %v416 = vsel %vm408, %v399, %v387
      %v417 = vsel %vm408, %v401, %v389
      %v418 = vsel %vm408, %v403, %v391
      %v419 = vsel %vm408, %v405, %v393
      %v420 = vsel %vm408, %v407, %v395
      %vm433 = vcmask 1041408
      %v434 = vrot.slane %v180, 6
      %v435 = vrot.slane %v181, 6
      %v436 = vrot.slane %v182, 6
      %v437 = vsel %vm433, %v434, %v436
      %v438 = vrot.slane %v183, 6
      %v439 = vsel %vm433, %v435, %v438
      %v440 = vrot.slane %v184, 6
      %v441 = vrot.slane %v185, 6
      %v442 = vrot.slane %v186, 6
      %v443 = vsel %vm433, %v440, %v442
      %v444 = vrot.slane %v187, 6
      %v445 = vsel %vm433, %v441, %v444
      %v446 = vrot.slane %v188, 6
      %v447 = vrot.slane %v189, 6
      %v448 = vrot.slane %v190, 6
      %v449 = vsel %vm433, %v446, %v448
      %v450 = vrot.slane %v191, 6
      %v451 = vsel %vm433, %v447, %v450
      %v464 = vsub.f32 %v204, %v434
      %v465 = vsub.f32 %v205, %v435
      %v466 = vsub.f32 %v206, %v437
      %v467 = vsub.f32 %v207, %v439
      %v468 = vsub.f32 %v208, %v440
      %v469 = vsub.f32 %v209, %v441
      %v470 = vsub.f32 %v210, %v443
      %v471 = vsub.f32 %v211, %v445
      %v472 = vsub.f32 %v212, %v446
      %v473 = vsub.f32 %v213, %v447
      %v474 = vsub.f32 %v214, %v449
      %v475 = vsub.f32 %v215, %v451
      %v476 = vsub.f32 %v298, %v341
      %v477 = vsub.f32 %v304, %v335
      %v478 = vsub.f32 %v299, %v342
      %v479 = vsub.f32 %v305, %v336
      %v480 = vsub.f32 %v300, %v343
      %v481 = vsub.f32 %v306, %v337
      %v482 = vsub.f32 %v301, %v344
      %v483 = vsub.f32 %v307, %v338
      %v484 = vsub.f32 %v302, %v345
      %v485 = vsub.f32 %v308, %v339
      %v486 = vsub.f32 %v303, %v346
      %v487 = vsub.f32 %v309, %v340
      %vm500 = vcmask 1045504
      %v501 = vrot.slane %v204, 2
      %v502 = vrot.slane %v206, 2
      %v503 = vsel %vm500, %v501, %v502
      %v504 = vrot.slane %v205, 2
      %v505 = vrot.slane %v207, 2
      %v506 = vsel %vm500, %v504, %v505
      %v507 = vrot.slane %v208, 2
      %v508 = vrot.slane %v210, 2
      %v509 = vsel %vm500, %v507, %v508
      %v510 = vrot.slane %v209, 2
      %v511 = vrot.slane %v211, 2
      %v512 = vsel %vm500, %v510, %v511
      %v513 = vrot.slane %v212, 2
      %v514 = vrot.slane %v214, 2
      %v515 = vsel %vm500, %v513, %v514
      %v516 = vrot.slane %v213, 2
      %v517 = vrot.slane %v215, 2
      %v518 = vsel %vm500, %v516, %v517
      %v531 = vadd.f32 %v180, %v503
      %v532 = vadd.f32 %v181, %v506
      %v533 = vadd.f32 %v182, %v502
      %v534 = vadd.f32 %v183, %v505
      %v535 = vadd.f32 %v184, %v509
      %v536 = vadd.f32 %v185, %v512
      %v537 = vadd.f32 %v186, %v508
      %v538 = vadd.f32 %v187, %v511
      %v539 = vadd.f32 %v188, %v515
      %v540 = vadd.f32 %v189, %v518
      %v541 = vadd.f32 %v190, %v514
      %v542 = vadd.f32 %v191, %v517
      %v555 = vrot.slane %v216, 1
      %v556 = vrot.slane %v218, 1
      %v557 = vsel %vm240, %v555, %v556
      %v558 = vrot.slane %v217, 1
      %v559 = vrot.slane %v219, 1
      %v560 = vsel %vm240, %v558, %v559
      %v561 = vrot.slane %v220, 1
      %v562 = vrot.slane %v222, 1
      %v563 = vsel %vm240, %v561, %v562
      %v564 = vrot.slane %v221, 1
      %v565 = vrot.slane %v223, 1
      %v566 = vsel %vm240, %v564, %v565
      %v567 = vrot.slane %v224, 1
      %v568 = vrot.slane %v226, 1
      %v569 = vsel %vm240, %v567, %v568
      %v570 = vrot.slane %v225, 1
      %v571 = vrot.slane %v227, 1
      %v572 = vsel %vm240, %v570, %v571
      %v585 = vsub.f32 %v531, %v557
      %v586 = vsub.f32 %v532, %v560
      %v587 = vsub.f32 %v533, %v556
      %v588 = vsub.f32 %v534, %v559
      %v589 = vsub.f32 %v535, %v563
      %v590 = vsub.f32 %v536, %v566
      %v591 = vsub.f32 %v537, %v562
      %v592 = vsub.f32 %v538, %v565
      %v593 = vsub.f32 %v539, %v569
      %v594 = vsub.f32 %v540, %v572
      %v595 = vsub.f32 %v541, %v568
      %v596 = vsub.f32 %v542, %v571
      %v597 = vmul.f32 %v585, %v585
      %v598 = vmul.f32 %v586, %v586
      %v599 = vmul.f32 %v587, %v587
      %v600 = vmul.f32 %v588, %v588
      %v601 = vmul.f32 %v589, %v589
      %v602 = vmul.f32 %v590, %v590
      %v603 = vmul.f32 %v591, %v591
      %v604 = vmul.f32 %v592, %v592
      %v605 = vmul.f32 %v593, %v593
      %v606 = vmul.f32 %v594, %v594
      %v607 = vmul.f32 %v595, %v595
      %v608 = vmul.f32 %v596, %v596
      %v610 = vlaneseq
      %v611 = vshrl.u32 %v610, 7
      %v612 = vsub.s32 0, %v611
      %v613 = vrot.slane %v173, %v612
      %v614 = vlaneseq
      %v615 = vshrl.u32 %v614, 7
      %v616 = vsub.s32 1, %v615
      %v617 = vrot.slane %v173, %v616
      %v620 = vmul.f32 %v597, %v613
      %v621 = vmul.f32 %v598, %v617
      %v622 = vmul.f32 %v599, %v613
      %v623 = vmul.f32 %v600, %v617
      %v624 = vmul.f32 %v601, %v613
      %v625 = vmul.f32 %v602, %v617
      %v626 = vmul.f32 %v603, %v613
      %v627 = vmul.f32 %v604, %v617
      %v628 = vmul.f32 %v605, %v613
      %v629 = vmul.f32 %v606, %v617
      %v630 = vmul.f32 %v607, %v613
      %v631 = vmul.f32 %v608, %v617
      %v632 = vadd.f32 %v620, %v621
      %633 = vadd.xlane.f32.xlu0 %v632
      %v634 = vpop.xlane.xlu0 %633
      %v635 = vsel %vm500, %v622, 0.0
      %v636 = vsel %vm500, %v623, 0.0
      %v637 = vadd.f32 %v635, %v636
      %638 = vadd.xlane.f32.xlu0 %v637
      %v639 = vpop.xlane.xlu0 %638
      %v640 = vadd.f32 %v624, %v625
      %641 = vadd.xlane.f32.xlu0 %v640
      %v642 = vpop.xlane.xlu0 %641
      %v643 = vsel %vm500, %v626, 0.0
      %v644 = vsel %vm500, %v627, 0.0
      %v645 = vadd.f32 %v643, %v644
      %646 = vadd.xlane.f32.xlu0 %v645
      %v647 = vpop.xlane.xlu0 %646
      %v648 = vadd.f32 %v628, %v629
      %649 = vadd.xlane.f32.xlu0 %v648
      %v650 = vpop.xlane.xlu0 %649
      %v651 = vsel %vm500, %v630, 0.0
      %v652 = vsel %vm500, %v631, 0.0
      %v653 = vadd.f32 %v651, %v652
      %654 = vadd.xlane.f32.xlu0 %v653
      %v655 = vpop.xlane.xlu0 %654
      %v656 = vadd.f32 %v298, %v341
      %v657 = vadd.f32 %v304, %v335
      %v658 = vadd.f32 %v299, %v342
      %v659 = vadd.f32 %v305, %v336
      %v660 = vadd.f32 %v300, %v343
      %v661 = vadd.f32 %v306, %v337
      %v662 = vadd.f32 %v301, %v344
      %v663 = vadd.f32 %v307, %v338
      %v664 = vadd.f32 %v302, %v345
      %v665 = vadd.f32 %v308, %v339
      %v666 = vadd.f32 %v303, %v346
      %v667 = vadd.f32 %v309, %v340
      %v668 = vsub.f32 %v656, %v557
      %v669 = vsub.f32 %v657, %v560
      %v670 = vsub.f32 %v658, %v556
      %v671 = vsub.f32 %v659, %v559
      %v672 = vsub.f32 %v660, %v563
      %v673 = vsub.f32 %v661, %v566
      %v674 = vsub.f32 %v662, %v562
      %v675 = vsub.f32 %v663, %v565
      %v676 = vsub.f32 %v664, %v569
      %v677 = vsub.f32 %v665, %v572
      %v678 = vsub.f32 %v666, %v568
      %v679 = vsub.f32 %v667, %v571
      %v680 = vmul.f32 %v668, %v668
      %v681 = vmul.f32 %v669, %v669
      %v682 = vmul.f32 %v670, %v670
      %v683 = vmul.f32 %v671, %v671
      %v684 = vmul.f32 %v672, %v672
      %v685 = vmul.f32 %v673, %v673
      %v686 = vmul.f32 %v674, %v674
      %v687 = vmul.f32 %v675, %v675
      %v688 = vmul.f32 %v676, %v676
      %v689 = vmul.f32 %v677, %v677
      %v690 = vmul.f32 %v678, %v678
      %v691 = vmul.f32 %v679, %v679
      %v692 = vmul.f32 %v680, %v613
      %v693 = vmul.f32 %v681, %v617
      %v694 = vmul.f32 %v682, %v613
      %v695 = vmul.f32 %v683, %v617
      %v696 = vmul.f32 %v684, %v613
      %v697 = vmul.f32 %v685, %v617
      %v698 = vmul.f32 %v686, %v613
      %v699 = vmul.f32 %v687, %v617
      %v700 = vmul.f32 %v688, %v613
      %v701 = vmul.f32 %v689, %v617
      %v702 = vmul.f32 %v690, %v613
      %v703 = vmul.f32 %v691, %v617
      %v704 = vadd.f32 %v692, %v693
      %705 = vadd.xlane.f32.xlu0 %v704
      %v706 = vpop.xlane.xlu0 %705
      %v707 = vsel %vm500, %v694, 0.0
      %v708 = vsel %vm500, %v695, 0.0
      %v709 = vadd.f32 %v707, %v708
      %710 = vadd.xlane.f32.xlu0 %v709
      %v711 = vpop.xlane.xlu0 %710
      %v712 = vadd.f32 %v696, %v697
      %713 = vadd.xlane.f32.xlu0 %v712
      %v714 = vpop.xlane.xlu0 %713
      %v715 = vsel %vm500, %v698, 0.0
      %v716 = vsel %vm500, %v699, 0.0
      %v717 = vadd.f32 %v715, %v716
      %718 = vadd.xlane.f32.xlu0 %v717
      %v719 = vpop.xlane.xlu0 %718
      %v720 = vadd.f32 %v700, %v701
      %721 = vadd.xlane.f32.xlu0 %v720
      %v722 = vpop.xlane.xlu0 %721
      %v723 = vsel %vm500, %v702, 0.0
      %v724 = vsel %vm500, %v703, 0.0
      %v725 = vadd.f32 %v723, %v724
      %726 = vadd.xlane.f32.xlu0 %v725
      %v727 = vpop.xlane.xlu0 %726
      %v728 = vadd.f32 %v372, %v415
      %v729 = vadd.f32 %v378, %v409
      %v730 = vadd.f32 %v373, %v416
      %v731 = vadd.f32 %v379, %v410
      %v732 = vadd.f32 %v374, %v417
      %v733 = vadd.f32 %v380, %v411
      %v734 = vadd.f32 %v375, %v418
      %v735 = vadd.f32 %v381, %v412
      %v736 = vadd.f32 %v376, %v419
      %v737 = vadd.f32 %v382, %v413
      %v738 = vadd.f32 %v377, %v420
      %v739 = vadd.f32 %v383, %v414
      %v740 = vsub.f32 %v728, %v557
      %v741 = vsub.f32 %v729, %v560
      %v742 = vsub.f32 %v730, %v556
      %v743 = vsub.f32 %v731, %v559
      %v744 = vsub.f32 %v732, %v563
      %v745 = vsub.f32 %v733, %v566
      %v746 = vsub.f32 %v734, %v562
      %v747 = vsub.f32 %v735, %v565
      %v748 = vsub.f32 %v736, %v569
      %v749 = vsub.f32 %v737, %v572
      %v750 = vsub.f32 %v738, %v568
      %v751 = vsub.f32 %v739, %v571
      %v752 = vmul.f32 %v740, %v740
      %v753 = vmul.f32 %v741, %v741
      %v754 = vmul.f32 %v742, %v742
      %v755 = vmul.f32 %v743, %v743
      %v756 = vmul.f32 %v744, %v744
      %v757 = vmul.f32 %v745, %v745
      %v758 = vmul.f32 %v746, %v746
      %v759 = vmul.f32 %v747, %v747
      %v760 = vmul.f32 %v748, %v748
      %v761 = vmul.f32 %v749, %v749
      %v762 = vmul.f32 %v750, %v750
      %v763 = vmul.f32 %v751, %v751
      %v764 = vmul.f32 %v752, %v613
      %v765 = vmul.f32 %v753, %v617
      %v766 = vmul.f32 %v754, %v613
      %v767 = vmul.f32 %v755, %v617
      %v768 = vmul.f32 %v756, %v613
      %v769 = vmul.f32 %v757, %v617
      %v770 = vmul.f32 %v758, %v613
      %v771 = vmul.f32 %v759, %v617
      %v772 = vmul.f32 %v760, %v613
      %v773 = vmul.f32 %v761, %v617
      %v774 = vmul.f32 %v762, %v613
      %v775 = vmul.f32 %v763, %v617
      %v776 = vadd.f32 %v764, %v765
      %777 = vadd.xlane.f32.xlu0 %v776
      %v778 = vpop.xlane.xlu0 %777
      %v779 = vsel %vm500, %v766, 0.0
      %v780 = vsel %vm500, %v767, 0.0
      %v781 = vadd.f32 %v779, %v780
      %782 = vadd.xlane.f32.xlu0 %v781
      %v783 = vpop.xlane.xlu0 %782
      %v784 = vadd.f32 %v768, %v769
      %785 = vadd.xlane.f32.xlu0 %v784
      %v786 = vpop.xlane.xlu0 %785
      %v787 = vsel %vm500, %v770, 0.0
      %v788 = vsel %vm500, %v771, 0.0
      %v789 = vadd.f32 %v787, %v788
      %790 = vadd.xlane.f32.xlu0 %v789
      %v791 = vpop.xlane.xlu0 %790
      %v792 = vadd.f32 %v772, %v773
      %793 = vadd.xlane.f32.xlu0 %v792
      %v794 = vpop.xlane.xlu0 %793
      %v795 = vsel %vm500, %v774, 0.0
      %v796 = vsel %vm500, %v775, 0.0
      %v797 = vadd.f32 %v795, %v796
      %798 = vadd.xlane.f32.xlu0 %v797
      %v799 = vpop.xlane.xlu0 %798
      %v812 = vrot.slane %v464, 2
      %v813 = vrot.slane %v466, 2
      %v814 = vsel %vm500, %v812, %v813
      %v815 = vrot.slane %v465, 2
      %v816 = vrot.slane %v467, 2
      %v817 = vsel %vm500, %v815, %v816
      %v818 = vrot.slane %v468, 2
      %v819 = vrot.slane %v470, 2
      %v820 = vsel %vm500, %v818, %v819
      %v821 = vrot.slane %v469, 2
      %v822 = vrot.slane %v471, 2
      %v823 = vsel %vm500, %v821, %v822
      %v824 = vrot.slane %v472, 2
      %v825 = vrot.slane %v474, 2
      %v826 = vsel %vm500, %v824, %v825
      %v827 = vrot.slane %v473, 2
      %v828 = vrot.slane %v475, 2
      %v829 = vsel %vm500, %v827, %v828
      %842 = vrot.lane.b32.xlu0 %v814, 112
      %v843 = vpop.permute.xlu0 %842
      %844 = vrot.lane.b32.xlu0 %v813, 112
      %v845 = vpop.permute.xlu0 %844
      %846 = vrot.lane.b32.xlu0 %v820, 112
      %v847 = vpop.permute.xlu0 %846
      %848 = vrot.lane.b32.xlu0 %v819, 112
      %v849 = vpop.permute.xlu0 %848
      %850 = vrot.lane.b32.xlu0 %v826, 112
      %v851 = vpop.permute.xlu0 %850
      %852 = vrot.lane.b32.xlu0 %v825, 112
      %v853 = vpop.permute.xlu0 %852
      %854 = vrot.lane.b32.xlu0 %v817, 112
      %v855 = vpop.permute.xlu0 %854
      %856 = vrot.lane.b32.xlu0 %v816, 112
      %v857 = vpop.permute.xlu0 %856
      %858 = vrot.lane.b32.xlu0 %v823, 112
      %v859 = vpop.permute.xlu0 %858
      %860 = vrot.lane.b32.xlu0 %v822, 112
      %v861 = vpop.permute.xlu0 %860
      %862 = vrot.lane.b32.xlu0 %v829, 112
      %v863 = vpop.permute.xlu0 %862
      %864 = vrot.lane.b32.xlu0 %v828, 112
      %v865 = vpop.permute.xlu0 %864
      %v866 = vsel %vm297, %v843, %v855
      %v867 = vsel %vm297, %v845, %v857
      %v868 = vsel %vm297, %v847, %v859
      %v869 = vsel %vm297, %v849, %v861
      %v870 = vsel %vm297, %v851, %v863
      %v871 = vsel %vm297, %v853, %v865
      %v872 = vsel %vm297, %v855, %v843
      %v873 = vsel %vm297, %v857, %v845
      %v874 = vsel %vm297, %v859, %v847
      %v875 = vsel %vm297, %v861, %v849
      %v876 = vsel %vm297, %v863, %v851
      %v877 = vsel %vm297, %v865, %v853
      %878 = vrot.lane.b32.xlu0 %v814, 16
      %v879 = vpop.permute.xlu0 %878
      %880 = vrot.lane.b32.xlu0 %v813, 16
      %v881 = vpop.permute.xlu0 %880
      %882 = vrot.lane.b32.xlu0 %v820, 16
      %v883 = vpop.permute.xlu0 %882
      %884 = vrot.lane.b32.xlu0 %v819, 16
      %v885 = vpop.permute.xlu0 %884
      %886 = vrot.lane.b32.xlu0 %v826, 16
      %v887 = vpop.permute.xlu0 %886
      %888 = vrot.lane.b32.xlu0 %v825, 16
      %v889 = vpop.permute.xlu0 %888
      %890 = vrot.lane.b32.xlu0 %v817, 16
      %v891 = vpop.permute.xlu0 %890
      %892 = vrot.lane.b32.xlu0 %v816, 16
      %v893 = vpop.permute.xlu0 %892
      %894 = vrot.lane.b32.xlu0 %v823, 16
      %v895 = vpop.permute.xlu0 %894
      %896 = vrot.lane.b32.xlu0 %v822, 16
      %v897 = vpop.permute.xlu0 %896
      %898 = vrot.lane.b32.xlu0 %v829, 16
      %v899 = vpop.permute.xlu0 %898
      %900 = vrot.lane.b32.xlu0 %v828, 16
      %v901 = vpop.permute.xlu0 %900
      %v902 = vsel %vm334, %v879, %v891
      %v903 = vsel %vm334, %v881, %v893
      %v904 = vsel %vm334, %v883, %v895
      %v905 = vsel %vm334, %v885, %v897
      %v906 = vsel %vm334, %v887, %v899
      %v907 = vsel %vm334, %v889, %v901
      %v908 = vsel %vm334, %v891, %v879
      %v909 = vsel %vm334, %v893, %v881
      %v910 = vsel %vm334, %v895, %v883
      %v911 = vsel %vm334, %v897, %v885
      %v912 = vsel %vm334, %v899, %v887
      %v913 = vsel %vm334, %v901, %v889
      %v914 = vsub.f32 %v866, %v908
      %v915 = vsub.f32 %v872, %v902
      %v916 = vsub.f32 %v867, %v909
      %v917 = vsub.f32 %v873, %v903
      %v918 = vsub.f32 %v868, %v910
      %v919 = vsub.f32 %v874, %v904
      %v920 = vsub.f32 %v869, %v911
      %v921 = vsub.f32 %v875, %v905
      %v922 = vsub.f32 %v870, %v912
      %v923 = vsub.f32 %v876, %v906
      %v924 = vsub.f32 %v871, %v913
      %v925 = vsub.f32 %v877, %v907
      %v926 = vmul.f32 %v914, %v914
      %v927 = vmul.f32 %v915, %v915
      %v928 = vmul.f32 %v916, %v916
      %v929 = vmul.f32 %v917, %v917
      %v930 = vmul.f32 %v918, %v918
      %v931 = vmul.f32 %v919, %v919
      %v932 = vmul.f32 %v920, %v920
      %v933 = vmul.f32 %v921, %v921
      %v934 = vmul.f32 %v922, %v922
      %v935 = vmul.f32 %v923, %v923
      %v936 = vmul.f32 %v924, %v924
      %v937 = vmul.f32 %v925, %v925
      %v938 = vmul.f32 %v926, %v613
      %v939 = vmul.f32 %v927, %v617
      %v940 = vmul.f32 %v928, %v613
      %v941 = vmul.f32 %v929, %v617
      %v942 = vmul.f32 %v930, %v613
      %v943 = vmul.f32 %v931, %v617
      %v944 = vmul.f32 %v932, %v613
      %v945 = vmul.f32 %v933, %v617
      %v946 = vmul.f32 %v934, %v613
      %v947 = vmul.f32 %v935, %v617
      %v948 = vmul.f32 %v936, %v613
      %v949 = vmul.f32 %v937, %v617
      %v950 = vadd.f32 %v938, %v939
      %951 = vadd.xlane.f32.xlu0 %v950
      %v952 = vpop.xlane.xlu0 %951
      %v953 = vsel %vm500, %v940, 0.0
      %v954 = vsel %vm500, %v941, 0.0
      %v955 = vadd.f32 %v953, %v954
      %956 = vadd.xlane.f32.xlu0 %v955
      %v957 = vpop.xlane.xlu0 %956
      %v958 = vadd.f32 %v942, %v943
      %959 = vadd.xlane.f32.xlu0 %v958
      %v960 = vpop.xlane.xlu0 %959
      %v961 = vsel %vm500, %v944, 0.0
      %v962 = vsel %vm500, %v945, 0.0
      %v963 = vadd.f32 %v961, %v962
      %964 = vadd.xlane.f32.xlu0 %v963
      %v965 = vpop.xlane.xlu0 %964
      %v966 = vadd.f32 %v946, %v947
      %967 = vadd.xlane.f32.xlu0 %v966
      %v968 = vpop.xlane.xlu0 %967
      %v969 = vsel %vm500, %v948, 0.0
      %v970 = vsel %vm500, %v949, 0.0
      %v971 = vadd.f32 %v969, %v970
      %972 = vadd.xlane.f32.xlu0 %v971
      %v973 = vpop.xlane.xlu0 %972
      %974 = vrot.lane.b32.xlu0 %v476, 127
      %v975 = vpop.permute.xlu0 %974
      %976 = vrot.lane.b32.xlu0 %v478, 127
      %v977 = vpop.permute.xlu0 %976
      %978 = vrot.lane.b32.xlu0 %v480, 127
      %v979 = vpop.permute.xlu0 %978
      %980 = vrot.lane.b32.xlu0 %v482, 127
      %v981 = vpop.permute.xlu0 %980
      %982 = vrot.lane.b32.xlu0 %v484, 127
      %v983 = vpop.permute.xlu0 %982
      %984 = vrot.lane.b32.xlu0 %v486, 127
      %v985 = vpop.permute.xlu0 %984
      %986 = vrot.lane.b32.xlu0 %v477, 127
      %v987 = vpop.permute.xlu0 %986
      %988 = vrot.lane.b32.xlu0 %v479, 127
      %v989 = vpop.permute.xlu0 %988
      %990 = vrot.lane.b32.xlu0 %v481, 127
      %v991 = vpop.permute.xlu0 %990
      %992 = vrot.lane.b32.xlu0 %v483, 127
      %v993 = vpop.permute.xlu0 %992
      %994 = vrot.lane.b32.xlu0 %v485, 127
      %v995 = vpop.permute.xlu0 %994
      %996 = vrot.lane.b32.xlu0 %v487, 127
      %v997 = vpop.permute.xlu0 %996
      %v998 = vsel %vm371, %v975, %v987
      %v999 = vsel %vm371, %v977, %v989
      %v1000 = vsel %vm371, %v979, %v991
      %v1001 = vsel %vm371, %v981, %v993
      %v1002 = vsel %vm371, %v983, %v995
      %v1003 = vsel %vm371, %v985, %v997
      %v1004 = vsel %vm371, %v987, %v975
      %v1005 = vsel %vm371, %v989, %v977
      %v1006 = vsel %vm371, %v991, %v979
      %v1007 = vsel %vm371, %v993, %v981
      %v1008 = vsel %vm371, %v995, %v983
      %v1009 = vsel %vm371, %v997, %v985
      %1010 = vrot.lane.b32.xlu0 %v476, 1
      %v1011 = vpop.permute.xlu0 %1010
      %1012 = vrot.lane.b32.xlu0 %v478, 1
      %v1013 = vpop.permute.xlu0 %1012
      %1014 = vrot.lane.b32.xlu0 %v480, 1
      %v1015 = vpop.permute.xlu0 %1014
      %1016 = vrot.lane.b32.xlu0 %v482, 1
      %v1017 = vpop.permute.xlu0 %1016
      %1018 = vrot.lane.b32.xlu0 %v484, 1
      %v1019 = vpop.permute.xlu0 %1018
      %1020 = vrot.lane.b32.xlu0 %v486, 1
      %v1021 = vpop.permute.xlu0 %1020
      %1022 = vrot.lane.b32.xlu0 %v477, 1
      %v1023 = vpop.permute.xlu0 %1022
      %1024 = vrot.lane.b32.xlu0 %v479, 1
      %v1025 = vpop.permute.xlu0 %1024
      %1026 = vrot.lane.b32.xlu0 %v481, 1
      %v1027 = vpop.permute.xlu0 %1026
      %1028 = vrot.lane.b32.xlu0 %v483, 1
      %v1029 = vpop.permute.xlu0 %1028
      %1030 = vrot.lane.b32.xlu0 %v485, 1
      %v1031 = vpop.permute.xlu0 %1030
      %1032 = vrot.lane.b32.xlu0 %v487, 1
      %v1033 = vpop.permute.xlu0 %1032
      %v1034 = vsel %vm408, %v1011, %v1023
      %v1035 = vsel %vm408, %v1013, %v1025
      %v1036 = vsel %vm408, %v1015, %v1027
      %v1037 = vsel %vm408, %v1017, %v1029
      %v1038 = vsel %vm408, %v1019, %v1031
      %v1039 = vsel %vm408, %v1021, %v1033
      %v1040 = vsel %vm408, %v1023, %v1011
      %v1041 = vsel %vm408, %v1025, %v1013
      %v1042 = vsel %vm408, %v1027, %v1015
      %v1043 = vsel %vm408, %v1029, %v1017
      %v1044 = vsel %vm408, %v1031, %v1019
      %v1045 = vsel %vm408, %v1033, %v1021
      %v1046 = vsub.f32 %v998, %v1040
      %v1047 = vsub.f32 %v1004, %v1034
      %v1048 = vsub.f32 %v999, %v1041
      %v1049 = vsub.f32 %v1005, %v1035
      %v1050 = vsub.f32 %v1000, %v1042
      %v1051 = vsub.f32 %v1006, %v1036
      %v1052 = vsub.f32 %v1001, %v1043
      %v1053 = vsub.f32 %v1007, %v1037
      %v1054 = vsub.f32 %v1002, %v1044
      %v1055 = vsub.f32 %v1008, %v1038
      %v1056 = vsub.f32 %v1003, %v1045
      %v1057 = vsub.f32 %v1009, %v1039
      %v1058 = vmul.f32 %v1046, %v1046
      %v1059 = vmul.f32 %v1047, %v1047
      %v1060 = vmul.f32 %v1048, %v1048
      %v1061 = vmul.f32 %v1049, %v1049
      %v1062 = vmul.f32 %v1050, %v1050
      %v1063 = vmul.f32 %v1051, %v1051
      %v1064 = vmul.f32 %v1052, %v1052
      %v1065 = vmul.f32 %v1053, %v1053
      %v1066 = vmul.f32 %v1054, %v1054
      %v1067 = vmul.f32 %v1055, %v1055
      %v1068 = vmul.f32 %v1056, %v1056
      %v1069 = vmul.f32 %v1057, %v1057
      %v1070 = vmul.f32 %v1058, %v613
      %v1071 = vmul.f32 %v1059, %v617
      %v1072 = vmul.f32 %v1060, %v613
      %v1073 = vmul.f32 %v1061, %v617
      %v1074 = vmul.f32 %v1062, %v613
      %v1075 = vmul.f32 %v1063, %v617
      %v1076 = vmul.f32 %v1064, %v613
      %v1077 = vmul.f32 %v1065, %v617
      %v1078 = vmul.f32 %v1066, %v613
      %v1079 = vmul.f32 %v1067, %v617
      %v1080 = vmul.f32 %v1068, %v613
      %v1081 = vmul.f32 %v1069, %v617
      %v1082 = vadd.f32 %v1070, %v1071
      %1083 = vadd.xlane.f32.xlu0 %v1082
      %v1084 = vpop.xlane.xlu0 %1083
      %v1085 = vsel %vm500, %v1072, 0.0
      %v1086 = vsel %vm500, %v1073, 0.0
      %v1087 = vadd.f32 %v1085, %v1086
      %1088 = vadd.xlane.f32.xlu0 %v1087
      %v1089 = vpop.xlane.xlu0 %1088
      %v1090 = vadd.f32 %v1074, %v1075
      %1091 = vadd.xlane.f32.xlu0 %v1090
      %v1092 = vpop.xlane.xlu0 %1091
      %v1093 = vsel %vm500, %v1076, 0.0
      %v1094 = vsel %vm500, %v1077, 0.0
      %v1095 = vadd.f32 %v1093, %v1094
      %1096 = vadd.xlane.f32.xlu0 %v1095
      %v1097 = vpop.xlane.xlu0 %1096
      %v1098 = vadd.f32 %v1078, %v1079
      %1099 = vadd.xlane.f32.xlu0 %v1098
      %v1100 = vpop.xlane.xlu0 %1099
      %v1101 = vsel %vm500, %v1080, 0.0
      %v1102 = vsel %vm500, %v1081, 0.0
      %v1103 = vadd.f32 %v1101, %v1102
      %1104 = vadd.xlane.f32.xlu0 %v1103
      %v1105 = vpop.xlane.xlu0 %1104
      %1106 = vrot.lane.b32.xlu0 %v814, 127
      %v1107 = vpop.permute.xlu0 %1106
      %1108 = vrot.lane.b32.xlu0 %v813, 127
      %v1109 = vpop.permute.xlu0 %1108
      %1110 = vrot.lane.b32.xlu0 %v820, 127
      %v1111 = vpop.permute.xlu0 %1110
      %1112 = vrot.lane.b32.xlu0 %v819, 127
      %v1113 = vpop.permute.xlu0 %1112
      %1114 = vrot.lane.b32.xlu0 %v826, 127
      %v1115 = vpop.permute.xlu0 %1114
      %1116 = vrot.lane.b32.xlu0 %v825, 127
      %v1117 = vpop.permute.xlu0 %1116
      %1118 = vrot.lane.b32.xlu0 %v817, 127
      %v1119 = vpop.permute.xlu0 %1118
      %1120 = vrot.lane.b32.xlu0 %v816, 127
      %v1121 = vpop.permute.xlu0 %1120
      %1122 = vrot.lane.b32.xlu0 %v823, 127
      %v1123 = vpop.permute.xlu0 %1122
      %1124 = vrot.lane.b32.xlu0 %v822, 127
      %v1125 = vpop.permute.xlu0 %1124
      %1126 = vrot.lane.b32.xlu0 %v829, 127
      %v1127 = vpop.permute.xlu0 %1126
      %1128 = vrot.lane.b32.xlu0 %v828, 127
      %v1129 = vpop.permute.xlu0 %1128
      %v1130 = vsel %vm371, %v1107, %v1119
      %v1131 = vsel %vm371, %v1109, %v1121
      %v1132 = vsel %vm371, %v1111, %v1123
      %v1133 = vsel %vm371, %v1113, %v1125
      %v1134 = vsel %vm371, %v1115, %v1127
      %v1135 = vsel %vm371, %v1117, %v1129
      %v1136 = vsel %vm371, %v1119, %v1107
      %v1137 = vsel %vm371, %v1121, %v1109
      %v1138 = vsel %vm371, %v1123, %v1111
      %v1139 = vsel %vm371, %v1125, %v1113
      %v1140 = vsel %vm371, %v1127, %v1115
      %v1141 = vsel %vm371, %v1129, %v1117
      %1142 = vrot.lane.b32.xlu0 %v814, 1
      %v1143 = vpop.permute.xlu0 %1142
      %1144 = vrot.lane.b32.xlu0 %v813, 1
      %v1145 = vpop.permute.xlu0 %1144
      %1146 = vrot.lane.b32.xlu0 %v820, 1
      %v1147 = vpop.permute.xlu0 %1146
      %1148 = vrot.lane.b32.xlu0 %v819, 1
      %v1149 = vpop.permute.xlu0 %1148
      %1150 = vrot.lane.b32.xlu0 %v826, 1
      %v1151 = vpop.permute.xlu0 %1150
      %1152 = vrot.lane.b32.xlu0 %v825, 1
      %v1153 = vpop.permute.xlu0 %1152
      %1154 = vrot.lane.b32.xlu0 %v817, 1
      %v1155 = vpop.permute.xlu0 %1154
      %1156 = vrot.lane.b32.xlu0 %v816, 1
      %v1157 = vpop.permute.xlu0 %1156
      %1158 = vrot.lane.b32.xlu0 %v823, 1
      %v1159 = vpop.permute.xlu0 %1158
      %1160 = vrot.lane.b32.xlu0 %v822, 1
      %v1161 = vpop.permute.xlu0 %1160
      %1162 = vrot.lane.b32.xlu0 %v829, 1
      %v1163 = vpop.permute.xlu0 %1162
      %1164 = vrot.lane.b32.xlu0 %v828, 1
      %v1165 = vpop.permute.xlu0 %1164
      %v1166 = vsel %vm408, %v1143, %v1155
      %v1167 = vsel %vm408, %v1145, %v1157
      %v1168 = vsel %vm408, %v1147, %v1159
      %v1169 = vsel %vm408, %v1149, %v1161
      %v1170 = vsel %vm408, %v1151, %v1163
      %v1171 = vsel %vm408, %v1153, %v1165
      %v1172 = vsel %vm408, %v1155, %v1143
      %v1173 = vsel %vm408, %v1157, %v1145
      %v1174 = vsel %vm408, %v1159, %v1147
      %v1175 = vsel %vm408, %v1161, %v1149
      %v1176 = vsel %vm408, %v1163, %v1151
      %v1177 = vsel %vm408, %v1165, %v1153
      %v1178 = vsub.f32 %v1130, %v1172
      %v1179 = vsub.f32 %v1136, %v1166
      %v1180 = vsub.f32 %v1131, %v1173
      %v1181 = vsub.f32 %v1137, %v1167
      %v1182 = vsub.f32 %v1132, %v1174
      %v1183 = vsub.f32 %v1138, %v1168
      %v1184 = vsub.f32 %v1133, %v1175
      %v1185 = vsub.f32 %v1139, %v1169
      %v1186 = vsub.f32 %v1134, %v1176
      %v1187 = vsub.f32 %v1140, %v1170
      %v1188 = vsub.f32 %v1135, %v1177
      %v1189 = vsub.f32 %v1141, %v1171
      %v1190 = vmul.f32 %v1178, %v1178
      %v1191 = vmul.f32 %v1179, %v1179
      %v1192 = vmul.f32 %v1180, %v1180
      %v1193 = vmul.f32 %v1181, %v1181
      %v1194 = vmul.f32 %v1182, %v1182
      %v1195 = vmul.f32 %v1183, %v1183
      %v1196 = vmul.f32 %v1184, %v1184
      %v1197 = vmul.f32 %v1185, %v1185
      %v1198 = vmul.f32 %v1186, %v1186
      %v1199 = vmul.f32 %v1187, %v1187
      %v1200 = vmul.f32 %v1188, %v1188
      %v1201 = vmul.f32 %v1189, %v1189
      %v1202 = vmul.f32 %v1190, %v613
      %v1203 = vmul.f32 %v1191, %v617
      %v1204 = vmul.f32 %v1192, %v613
      %v1205 = vmul.f32 %v1193, %v617
      %v1206 = vmul.f32 %v1194, %v613
      %v1207 = vmul.f32 %v1195, %v617
      %v1208 = vmul.f32 %v1196, %v613
      %v1209 = vmul.f32 %v1197, %v617
      %v1210 = vmul.f32 %v1198, %v613
      %v1211 = vmul.f32 %v1199, %v617
      %v1212 = vmul.f32 %v1200, %v613
      %v1213 = vmul.f32 %v1201, %v617
      %v1214 = vadd.f32 %v1202, %v1203
      %1215 = vadd.xlane.f32.xlu0 %v1214
      %v1216 = vpop.xlane.xlu0 %1215
      %v1217 = vsel %vm500, %v1204, 0.0
      %v1218 = vsel %vm500, %v1205, 0.0
      %v1219 = vadd.f32 %v1217, %v1218
      %1220 = vadd.xlane.f32.xlu0 %v1219
      %v1221 = vpop.xlane.xlu0 %1220
      %v1222 = vadd.f32 %v1206, %v1207
      %1223 = vadd.xlane.f32.xlu0 %v1222
      %v1224 = vpop.xlane.xlu0 %1223
      %v1225 = vsel %vm500, %v1208, 0.0
      %v1226 = vsel %vm500, %v1209, 0.0
      %v1227 = vadd.f32 %v1225, %v1226
      %1228 = vadd.xlane.f32.xlu0 %v1227
      %v1229 = vpop.xlane.xlu0 %1228
      %v1230 = vadd.f32 %v1210, %v1211
      %1231 = vadd.xlane.f32.xlu0 %v1230
      %v1232 = vpop.xlane.xlu0 %1231
      %v1233 = vsel %vm500, %v1212, 0.0
      %v1234 = vsel %vm500, %v1213, 0.0
      %v1235 = vadd.f32 %v1233, %v1234
      %1236 = vadd.xlane.f32.xlu0 %v1235
      %v1237 = vpop.xlane.xlu0 %1236
      %s1238 = smul.u32 %s18, 16
      %s1239 = ssub.s32 13, %s1238
      %v1240 = vstv %s1239
      %vm1241 = vcmp.le.s32.totalorder %v296, %v1240
      %v1242 = vsel %vm1241, 1, 0
      %v1243 = vcvt.s32.f32 %v1242
      %v1244 = vld [vmem:[%s172] sm:$0x7]
      %1247 = vbcast.lane.b32.xlu0 %v1243, 256
      %v1248 = vpop.permute.xlu0 %1247
      %s1250 = sor.u32 256, 8
      %1251 = vbcast.lane.b32.xlu0 %v1243, %s1250
      %v1252 = vpop.permute.xlu0 %1251
      %v1255 = vmul.f32 %v634, %v1248
      %v1256 = vmul.f32 %v639, %v1252
      %v1257 = vmul.f32 %v642, %v1248
      %v1258 = vmul.f32 %v647, %v1252
      %v1259 = vmul.f32 %v650, %v1248
      %v1260 = vmul.f32 %v655, %v1252
      %1267 = vset.pattern.permute.xlu0 0
      %1268 = vperm.xlu0 %1267, %v1255
      %v1269 = vpop.permute.xlu0 %1268
      %1270 = vset.pattern.permute.xlu0 0
      %1271 = vperm.xlu0 %1270, %v1256
      %v1272 = vpop.permute.xlu0 %1271
      %1273 = vset.pattern.permute.xlu0 0
      %1274 = vperm.xlu0 %1273, %v1257
      %v1275 = vpop.permute.xlu0 %1274
      %1276 = vset.pattern.permute.xlu0 0
      %1277 = vperm.xlu0 %1276, %v1258
      %v1278 = vpop.permute.xlu0 %1277
      %1279 = vset.pattern.permute.xlu0 0
      %1280 = vperm.xlu0 %1279, %v1259
      %v1281 = vpop.permute.xlu0 %1280
      %1282 = vset.pattern.permute.xlu0 0
      %1283 = vperm.xlu0 %1282, %v1260
      %v1284 = vpop.permute.xlu0 %1283
      %v1285 = vlaneseq
      %v1286 = vshrl.u32 %v1285, 7
      %v1287 = vsub.s32 %v296, %v1286
      %v1288 = vrot.slane %v1269, %v1287
      %v1289 = vadd.s32 %v296, 4294967288
      %v1290 = vlaneseq
      %v1291 = vshrl.u32 %v1290, 7
      %v1292 = vsub.s32 %v1289, %v1291
      %v1293 = vrot.slane %v1272, %v1292
      %vm1294 = vcmask 130112
      %v1295 = vsel %vm1294, %v1293, %v1288
      %v1296 = vlaneseq
      %v1297 = vshrl.u32 %v1296, 7
      %v1298 = vsub.s32 %v296, %v1297
      %v1299 = vrot.slane %v1275, %v1298
      %v1300 = vlaneseq
      %v1301 = vshrl.u32 %v1300, 7
      %v1302 = vsub.s32 %v1289, %v1301
      %v1303 = vrot.slane %v1278, %v1302
      %v1304 = vsel %vm1294, %v1303, %v1299
      %v1305 = vlaneseq
      %v1306 = vshrl.u32 %v1305, 7
      %v1307 = vsub.s32 %v296, %v1306
      %v1308 = vrot.slane %v1281, %v1307
      %v1309 = vlaneseq
      %v1310 = vshrl.u32 %v1309, 7
      %v1311 = vsub.s32 %v1289, %v1310
      %v1312 = vrot.slane %v1284, %v1311
      %v1313 = vsel %vm1294, %v1312, %v1308
      %vm1314 = vcmask 1041409
      %v1315 = vsel %vm1314, %v1304, %v1295
      %vm1316 = vcmask 1042434
      %v1317 = vsel %vm1316, %v1313, %v1315
      %vm1319 = vcmask 108544
      %v1320 = vsel %vm1319, %v1317, 0.0
      %1321 = vadd.xlane.f32.xlu0 %v1320
      %v1322 = vpop.xlane.xlu0 %1321
      %vm1323 = vcmp.eq.s32.totalorder %v296, 0
      %v1324 = vsel %vm1323, 1, 0
      %vm1325 = vcmp.eq.s32.totalorder %v1324, 1
      %v1326 = vsel %vm1325, %v1322, 0.0
      %v1327 = vadd.f32 %v1326, 0.0
      %v1328 = vmul.f32 %v706, %v1248
      %v1329 = vmul.f32 %v711, %v1252
      %v1330 = vmul.f32 %v714, %v1248
      %v1331 = vmul.f32 %v719, %v1252
      %v1332 = vmul.f32 %v722, %v1248
      %v1333 = vmul.f32 %v727, %v1252
      %1340 = vset.pattern.permute.xlu0 0
      %1341 = vperm.xlu0 %1340, %v1328
      %v1342 = vpop.permute.xlu0 %1341
      %1343 = vset.pattern.permute.xlu0 0
      %1344 = vperm.xlu0 %1343, %v1329
      %v1345 = vpop.permute.xlu0 %1344
      %1346 = vset.pattern.permute.xlu0 0
      %1347 = vperm.xlu0 %1346, %v1330
      %v1348 = vpop.permute.xlu0 %1347
      %1349 = vset.pattern.permute.xlu0 0
      %1350 = vperm.xlu0 %1349, %v1331
      %v1351 = vpop.permute.xlu0 %1350
      %1352 = vset.pattern.permute.xlu0 0
      %1353 = vperm.xlu0 %1352, %v1332
      %v1354 = vpop.permute.xlu0 %1353
      %1355 = vset.pattern.permute.xlu0 0
      %1356 = vperm.xlu0 %1355, %v1333
      %v1357 = vpop.permute.xlu0 %1356
      %v1358 = vlaneseq
      %v1359 = vshrl.u32 %v1358, 7
      %v1360 = vsub.s32 %v296, %v1359
      %v1361 = vrot.slane %v1342, %v1360
      %v1362 = vlaneseq
      %v1363 = vshrl.u32 %v1362, 7
      %v1364 = vsub.s32 %v1289, %v1363
      %v1365 = vrot.slane %v1345, %v1364
      %v1366 = vsel %vm1294, %v1365, %v1361
      %v1367 = vlaneseq
      %v1368 = vshrl.u32 %v1367, 7
      %v1369 = vsub.s32 %v296, %v1368
      %v1370 = vrot.slane %v1348, %v1369
      %v1371 = vlaneseq
      %v1372 = vshrl.u32 %v1371, 7
      %v1373 = vsub.s32 %v1289, %v1372
      %v1374 = vrot.slane %v1351, %v1373
      %v1375 = vsel %vm1294, %v1374, %v1370
      %v1376 = vlaneseq
      %v1377 = vshrl.u32 %v1376, 7
      %v1378 = vsub.s32 %v296, %v1377
      %v1379 = vrot.slane %v1354, %v1378
      %v1380 = vlaneseq
      %v1381 = vshrl.u32 %v1380, 7
      %v1382 = vsub.s32 %v1289, %v1381
      %v1383 = vrot.slane %v1357, %v1382
      %v1384 = vsel %vm1294, %v1383, %v1379
      %v1385 = vsel %vm1314, %v1375, %v1366
      %v1386 = vsel %vm1316, %v1384, %v1385
      %v1388 = vsel %vm1319, %v1386, 0.0
      %1389 = vadd.xlane.f32.xlu0 %v1388
      %v1390 = vpop.xlane.xlu0 %1389
      %vm1391 = vcmp.eq.s32.totalorder %v296, 1
      %v1392 = vsel %vm1391, 1, 0
      %vm1393 = vcmp.eq.s32.totalorder %v1392, 1
      %v1394 = vsel %vm1393, %v1390, 0.0
      %v1395 = vadd.f32 %v1327, %v1394
      %v1396 = vmul.f32 %v778, %v1248
      %v1397 = vmul.f32 %v783, %v1252
      %v1398 = vmul.f32 %v786, %v1248
      %v1399 = vmul.f32 %v791, %v1252
      %v1400 = vmul.f32 %v794, %v1248
      %v1401 = vmul.f32 %v799, %v1252
      %1408 = vset.pattern.permute.xlu0 0
      %1409 = vperm.xlu0 %1408, %v1396
      %v1410 = vpop.permute.xlu0 %1409
      %1411 = vset.pattern.permute.xlu0 0
      %1412 = vperm.xlu0 %1411, %v1397
      %v1413 = vpop.permute.xlu0 %1412
      %1414 = vset.pattern.permute.xlu0 0
      %1415 = vperm.xlu0 %1414, %v1398
      %v1416 = vpop.permute.xlu0 %1415
      %1417 = vset.pattern.permute.xlu0 0
      %1418 = vperm.xlu0 %1417, %v1399
      %v1419 = vpop.permute.xlu0 %1418
      %1420 = vset.pattern.permute.xlu0 0
      %1421 = vperm.xlu0 %1420, %v1400
      %v1422 = vpop.permute.xlu0 %1421
      %1423 = vset.pattern.permute.xlu0 0
      %1424 = vperm.xlu0 %1423, %v1401
      %v1425 = vpop.permute.xlu0 %1424
      %v1426 = vlaneseq
      %v1427 = vshrl.u32 %v1426, 7
      %v1428 = vsub.s32 %v296, %v1427
      %v1429 = vrot.slane %v1410, %v1428
      %v1430 = vlaneseq
      %v1431 = vshrl.u32 %v1430, 7
      %v1432 = vsub.s32 %v1289, %v1431
      %v1433 = vrot.slane %v1413, %v1432
      %v1434 = vsel %vm1294, %v1433, %v1429
      %v1435 = vlaneseq
      %v1436 = vshrl.u32 %v1435, 7
      %v1437 = vsub.s32 %v296, %v1436
      %v1438 = vrot.slane %v1416, %v1437
      %v1439 = vlaneseq
      %v1440 = vshrl.u32 %v1439, 7
      %v1441 = vsub.s32 %v1289, %v1440
      %v1442 = vrot.slane %v1419, %v1441
      %v1443 = vsel %vm1294, %v1442, %v1438
      %v1444 = vlaneseq
      %v1445 = vshrl.u32 %v1444, 7
      %v1446 = vsub.s32 %v296, %v1445
      %v1447 = vrot.slane %v1422, %v1446
      %v1448 = vlaneseq
      %v1449 = vshrl.u32 %v1448, 7
      %v1450 = vsub.s32 %v1289, %v1449
      %v1451 = vrot.slane %v1425, %v1450
      %v1452 = vsel %vm1294, %v1451, %v1447
      %v1453 = vsel %vm1314, %v1443, %v1434
      %v1454 = vsel %vm1316, %v1452, %v1453
      %v1456 = vsel %vm1319, %v1454, 0.0
      %1457 = vadd.xlane.f32.xlu0 %v1456
      %v1458 = vpop.xlane.xlu0 %1457
      %vm1459 = vcmp.eq.s32.totalorder %v296, 2
      %v1460 = vsel %vm1459, 1, 0
      %vm1461 = vcmp.eq.s32.totalorder %v1460, 1
      %v1462 = vsel %vm1461, %v1458, 0.0
      %v1463 = vadd.f32 %v1395, %v1462
      %v1464 = vmul.f32 %v952, %v1248
      %v1465 = vmul.f32 %v957, %v1252
      %v1466 = vmul.f32 %v960, %v1248
      %v1467 = vmul.f32 %v965, %v1252
      %v1468 = vmul.f32 %v968, %v1248
      %v1469 = vmul.f32 %v973, %v1252
      %1476 = vset.pattern.permute.xlu0 0
      %1477 = vperm.xlu0 %1476, %v1464
      %v1478 = vpop.permute.xlu0 %1477
      %1479 = vset.pattern.permute.xlu0 0
      %1480 = vperm.xlu0 %1479, %v1465
      %v1481 = vpop.permute.xlu0 %1480
      %1482 = vset.pattern.permute.xlu0 0
      %1483 = vperm.xlu0 %1482, %v1466
      %v1484 = vpop.permute.xlu0 %1483
      %1485 = vset.pattern.permute.xlu0 0
      %1486 = vperm.xlu0 %1485, %v1467
      %v1487 = vpop.permute.xlu0 %1486
      %1488 = vset.pattern.permute.xlu0 0
      %1489 = vperm.xlu0 %1488, %v1468
      %v1490 = vpop.permute.xlu0 %1489
      %1491 = vset.pattern.permute.xlu0 0
      %1492 = vperm.xlu0 %1491, %v1469
      %v1493 = vpop.permute.xlu0 %1492
      %v1494 = vlaneseq
      %v1495 = vshrl.u32 %v1494, 7
      %v1496 = vsub.s32 %v296, %v1495
      %v1497 = vrot.slane %v1478, %v1496
      %v1498 = vlaneseq
      %v1499 = vshrl.u32 %v1498, 7
      %v1500 = vsub.s32 %v1289, %v1499
      %v1501 = vrot.slane %v1481, %v1500
      %v1502 = vsel %vm1294, %v1501, %v1497
      %v1503 = vlaneseq
      %v1504 = vshrl.u32 %v1503, 7
      %v1505 = vsub.s32 %v296, %v1504
      %v1506 = vrot.slane %v1484, %v1505
      %v1507 = vlaneseq
      %v1508 = vshrl.u32 %v1507, 7
      %v1509 = vsub.s32 %v1289, %v1508
      %v1510 = vrot.slane %v1487, %v1509
      %v1511 = vsel %vm1294, %v1510, %v1506
      %v1512 = vlaneseq
      %v1513 = vshrl.u32 %v1512, 7
      %v1514 = vsub.s32 %v296, %v1513
      %v1515 = vrot.slane %v1490, %v1514
      %v1516 = vlaneseq
      %v1517 = vshrl.u32 %v1516, 7
      %v1518 = vsub.s32 %v1289, %v1517
      %v1519 = vrot.slane %v1493, %v1518
      %v1520 = vsel %vm1294, %v1519, %v1515
      %v1521 = vsel %vm1314, %v1511, %v1502
      %v1522 = vsel %vm1316, %v1520, %v1521
      %v1524 = vsel %vm1319, %v1522, 0.0
      %1525 = vadd.xlane.f32.xlu0 %v1524
      %v1526 = vpop.xlane.xlu0 %1525
      %vm1527 = vcmp.eq.s32.totalorder %v296, 3
      %v1528 = vsel %vm1527, 1, 0
      %vm1529 = vcmp.eq.s32.totalorder %v1528, 1
      %v1530 = vsel %vm1529, %v1526, 0.0
      %v1531 = vadd.f32 %v1463, %v1530
      %v1532 = vmul.f32 %v1084, %v1248
      %v1533 = vmul.f32 %v1089, %v1252
      %v1534 = vmul.f32 %v1092, %v1248
      %v1535 = vmul.f32 %v1097, %v1252
      %v1536 = vmul.f32 %v1100, %v1248
      %v1537 = vmul.f32 %v1105, %v1252
      %1544 = vset.pattern.permute.xlu0 0
      %1545 = vperm.xlu0 %1544, %v1532
      %v1546 = vpop.permute.xlu0 %1545
      %1547 = vset.pattern.permute.xlu0 0
      %1548 = vperm.xlu0 %1547, %v1533
      %v1549 = vpop.permute.xlu0 %1548
      %1550 = vset.pattern.permute.xlu0 0
      %1551 = vperm.xlu0 %1550, %v1534
      %v1552 = vpop.permute.xlu0 %1551
      %1553 = vset.pattern.permute.xlu0 0
      %1554 = vperm.xlu0 %1553, %v1535
      %v1555 = vpop.permute.xlu0 %1554
      %1556 = vset.pattern.permute.xlu0 0
      %1557 = vperm.xlu0 %1556, %v1536
      %v1558 = vpop.permute.xlu0 %1557
      %1559 = vset.pattern.permute.xlu0 0
      %1560 = vperm.xlu0 %1559, %v1537
      %v1561 = vpop.permute.xlu0 %1560
      %v1562 = vlaneseq
      %v1563 = vshrl.u32 %v1562, 7
      %v1564 = vsub.s32 %v296, %v1563
      %v1565 = vrot.slane %v1546, %v1564
      %v1566 = vlaneseq
      %v1567 = vshrl.u32 %v1566, 7
      %v1568 = vsub.s32 %v1289, %v1567
      %v1569 = vrot.slane %v1549, %v1568
      %v1570 = vsel %vm1294, %v1569, %v1565
      %v1571 = vlaneseq
      %v1572 = vshrl.u32 %v1571, 7
      %v1573 = vsub.s32 %v296, %v1572
      %v1574 = vrot.slane %v1552, %v1573
      %v1575 = vlaneseq
      %v1576 = vshrl.u32 %v1575, 7
      %v1577 = vsub.s32 %v1289, %v1576
      %v1578 = vrot.slane %v1555, %v1577
      %v1579 = vsel %vm1294, %v1578, %v1574
      %v1580 = vlaneseq
      %v1581 = vshrl.u32 %v1580, 7
      %v1582 = vsub.s32 %v296, %v1581
      %v1583 = vrot.slane %v1558, %v1582
      %v1584 = vlaneseq
      %v1585 = vshrl.u32 %v1584, 7
      %v1586 = vsub.s32 %v1289, %v1585
      %v1587 = vrot.slane %v1561, %v1586
      %v1588 = vsel %vm1294, %v1587, %v1583
      %v1589 = vsel %vm1314, %v1579, %v1570
      %v1590 = vsel %vm1316, %v1588, %v1589
      %v1592 = vsel %vm1319, %v1590, 0.0
      %1593 = vadd.xlane.f32.xlu0 %v1592
      %v1594 = vpop.xlane.xlu0 %1593
      %vm1595 = vcmp.eq.s32.totalorder %v296, 4
      %v1596 = vsel %vm1595, 1, 0
      %vm1597 = vcmp.eq.s32.totalorder %v1596, 1
      %v1598 = vsel %vm1597, %v1594, 0.0
      %v1599 = vadd.f32 %v1531, %v1598
      %v1600 = vmul.f32 %v1216, %v1248
      %v1601 = vmul.f32 %v1221, %v1252
      %v1602 = vmul.f32 %v1224, %v1248
      %v1603 = vmul.f32 %v1229, %v1252
      %v1604 = vmul.f32 %v1232, %v1248
      %v1605 = vmul.f32 %v1237, %v1252
      %1612 = vset.pattern.permute.xlu0 0
      %1613 = vperm.xlu0 %1612, %v1600
      %v1614 = vpop.permute.xlu0 %1613
      %1615 = vset.pattern.permute.xlu0 0
      %1616 = vperm.xlu0 %1615, %v1601
      %v1617 = vpop.permute.xlu0 %1616
      %1618 = vset.pattern.permute.xlu0 0
      %1619 = vperm.xlu0 %1618, %v1602
      %v1620 = vpop.permute.xlu0 %1619
      %1621 = vset.pattern.permute.xlu0 0
      %1622 = vperm.xlu0 %1621, %v1603
      %v1623 = vpop.permute.xlu0 %1622
      %1624 = vset.pattern.permute.xlu0 0
      %1625 = vperm.xlu0 %1624, %v1604
      %v1626 = vpop.permute.xlu0 %1625
      %1627 = vset.pattern.permute.xlu0 0
      %1628 = vperm.xlu0 %1627, %v1605
      %v1629 = vpop.permute.xlu0 %1628
      %v1630 = vlaneseq
      %v1631 = vshrl.u32 %v1630, 7
      %v1632 = vsub.s32 %v296, %v1631
      %v1633 = vrot.slane %v1614, %v1632
      %v1634 = vlaneseq
      %v1635 = vshrl.u32 %v1634, 7
      %v1636 = vsub.s32 %v1289, %v1635
      %v1637 = vrot.slane %v1617, %v1636
      %v1638 = vsel %vm1294, %v1637, %v1633
      %v1639 = vlaneseq
      %v1640 = vshrl.u32 %v1639, 7
      %v1641 = vsub.s32 %v296, %v1640
      %v1642 = vrot.slane %v1620, %v1641
      %v1643 = vlaneseq
      %v1644 = vshrl.u32 %v1643, 7
      %v1645 = vsub.s32 %v1289, %v1644
      %v1646 = vrot.slane %v1623, %v1645
      %v1647 = vsel %vm1294, %v1646, %v1642
      %v1648 = vlaneseq
      %v1649 = vshrl.u32 %v1648, 7
      %v1650 = vsub.s32 %v296, %v1649
      %v1651 = vrot.slane %v1626, %v1650
      %v1652 = vlaneseq
      %v1653 = vshrl.u32 %v1652, 7
      %v1654 = vsub.s32 %v1289, %v1653
      %v1655 = vrot.slane %v1629, %v1654
      %v1656 = vsel %vm1294, %v1655, %v1651
      %v1657 = vsel %vm1314, %v1647, %v1638
      %v1658 = vsel %vm1316, %v1656, %v1657
      %v1660 = vsel %vm1319, %v1658, 0.0
      %1661 = vadd.xlane.f32.xlu0 %v1660
      %v1662 = vpop.xlane.xlu0 %1661
      %vm1663 = vcmp.eq.s32.totalorder %v296, 5
      %v1664 = vsel %vm1663, 1, 0
      %vm1665 = vcmp.eq.s32.totalorder %v1664, 1
      %v1666 = vsel %vm1665, %v1662, 0.0
      %v1667 = vadd.f32 %v1599, %v1666
      %v1668 = vadd.f32 %v1244, %v1667
      %vm1669 = vcmask 43008
      %1670 = vst.msk [vmem:[%s172] sm:$0x7] %vm1669, %v1668
      %p1671 = scmp.lt.s32.totalorder %s17, 1
      %s1672 = scalar_select %p1671, %s17, 1
      %s1673 = smul.addr %s1672, 4
      %s1674 = scalar_lea.vmem %s2, %s1673
      // Predicated region
      $region33: #{bending_energy_loss.1} parent=27 // pred_check
        %p1675 = pneg %p92
      $region34: #{bending_energy_loss.1} parent=27 // pred_check_branch
        %1677 = sbr.rel (%p1675) target = $region36
      $region35: #{bending_energy_loss.1} parent=27 // pred_region
        _
      $region36: #{bending_energy_loss.1} parent=27 // pred_fallthru
        _
    $region28: #{bending_energy_loss.1} parent=5 // pred_fallthru
      _
    %p1678 = scmp.le.s32.totalorder 2, %s8
    // Predicated region
    $region37: #{bending_energy_loss.1} parent=5 // pred_check
      %p1679 = pneg %p1678
    $region38: #{bending_energy_loss.1} parent=5 // pred_check_branch
      %1681 = sbr.rel (%p1679) target = $region40
    $region39: #{bending_energy_loss.1} parent=5 // pred_region
      %s1682 = ssub.s32 %s8, 2
      // Predicated region
      $region41: #{bending_energy_loss.1} parent=39 // pred_check
        %p1683 = pneg %p98
      $region42: #{bending_energy_loss.1} parent=39 // pred_check_branch
        %1685 = sbr.rel (%p1683) target = $region44
      $region43: #{bending_energy_loss.1} parent=39 // pred_region
        %p1686 = scmp.lt.s32.totalorder %s19, 1
        %s1687 = scalar_select %p1686, %s19, 1
        %s1688 = smul.addr %s1687, 4
        %s1689 = scalar_lea.vmem %s2, %s1688
      $region44: #{bending_energy_loss.1} parent=39 // pred_fallthru
        _
    $region40: #{bending_energy_loss.1} parent=5 // pred_fallthru
      _
  $region6: #{bending_energy_loss.1} parent=0 // loop_footer
    %s12 = sadd.s32 1, %s8
  $region7: #{bending_energy_loss.1} parent=0 // loop_footer_branch
    %7 = sbr.rel target = $region3
  $region8: #{bending_energy_loss.1} parent=0 // loop_exit
    _

</llo_original>
